<compile_context>
chip_gen: v7x
topology: tpu7x:2x2x1
jax: 0.10.0
libtpu: 0.0.40
codegen_flags: <defaults>
</compile_context>

<pallas_src>
import jax
import jax.numpy as jnp
from jax import lax
from jax.experimental import pallas as pl
from jax.experimental.pallas import tpu as pltpu


# ----------------------------- model dims -----------------------------------
BATCH = 2
SEQ = 8
EMB = 32
HID = 32
VOCAB = 16
VOCAB_PAD = 128          # lane-dense output slab (wrapper slices back to VOCAB)
ROWS = SEQ * BATCH       # time-major flattened (t, b) rows


# ----------------------------- Pallas kernel --------------------------------
def seq2seq_kernel(
    tok_ref,      # (ROWS, 1)        int32 token ids, time-major
    emb_ref,      # (VOCAB, EMB)     embedding table
    w_ih_ref,     # (EMB, 2*HID)     [encoder | decoder] input->hidden, stacked
    e_b_ref,      # (1, HID)         encoder bias
    d_b_ref,      # (1, HID)         decoder bias
    e_whh_ref,    # (HID, HID)       encoder hidden->hidden
    d_whh_ref,    # (HID, HID)       decoder hidden->hidden
    w_out_ref,    # (HID, VOCAB_PAD) output projection (zero-padded lanes)
    b_out_ref,    # (1, VOCAB_PAD)
    out_ref,      # (ROWS, VOCAB_PAD) logits, time-major, lane-dense
    encx_ref,     # scratch: (ROWS, HID) precomputed encoder x-projection
    decx_ref,     # scratch: (ROWS, HID) precomputed decoder x-projection
    hs_ref,       # scratch: (ROWS, HID) stacked decoder hidden states
):
    # ---- embedding lookup as one-hot matmul (in-kernel gather) ----
    tok = tok_ref[...]                                             # (ROWS, 1)
    vocab_iota = lax.broadcasted_iota(jnp.int32, (ROWS, VOCAB), 1)
    onehot = (tok == vocab_iota).astype(jnp.float32)               # (ROWS, VOCAB)
    x_all = jnp.dot(onehot, emb_ref[...],
                    preferred_element_type=jnp.float32)            # (ROWS, EMB)

    # ---- hoisted input->hidden projections (enc & dec in one matmul) ----
    xproj = jnp.dot(x_all, w_ih_ref[...],
                    preferred_element_type=jnp.float32)            # (ROWS, 2H)
    encx_ref[...] = xproj[:, :HID] + e_b_ref[...]                  # bias folded once
    decx_ref[...] = xproj[:, HID:] + d_b_ref[...]

    # ---- hoisted recurrent weights ----
    e_whh = e_whh_ref[...]
    d_whh = d_whh_ref[...]

    h0 = jnp.zeros((BATCH, HID), jnp.float32)

    # ---- encoder: h_t = tanh(precomputed_x[t] + h_{t-1} @ W_hh) ----
    def enc_body(t, h):
        x_t = encx_ref[pl.ds(t * BATCH, BATCH), :]                 # (BATCH, HID)
        return jnp.tanh(
            x_t + jnp.dot(h, e_whh, preferred_element_type=jnp.float32))

    h = lax.fori_loop(0, SEQ, enc_body, h0, unroll=True)

    # ---- decoder: teacher-forced on source embeddings ----
    def dec_body(t, h):
        x_t = decx_ref[pl.ds(t * BATCH, BATCH), :]                 # (BATCH, HID)
        h_new = jnp.tanh(
            x_t + jnp.dot(h, d_whh, preferred_element_type=jnp.float32))
        hs_ref[pl.ds(t * BATCH, BATCH), :] = h_new                 # off critical path
        return h_new

    lax.fori_loop(0, SEQ, dec_body, h, unroll=True)

    # ---- deferred, batched vocab projection; single lane-dense store ----
    out_ref[...] = (
        jnp.dot(hs_ref[...], w_out_ref[...],
                preferred_element_type=jnp.float32)
        + b_out_ref[...]
    )


# ----------------------------- wrapper ---------------------------------------
def seq2seq_forward(source_tokens, params):
    """source_tokens: (batch, seq) int32 ids -> (batch, seq, vocab) f32 logits."""
    # time-major flat token ids; 16 int32s, trivially cheap.
    tok = source_tokens.T.reshape(ROWS, 1).astype(jnp.int32)

    vmem = pl.BlockSpec(memory_space=pltpu.MemorySpace.VMEM)

    out2d = pl.pallas_call(
        seq2seq_kernel,
        out_shape=jax.ShapeDtypeStruct((ROWS, VOCAB_PAD), jnp.float32),
        in_specs=[vmem] * 9,
        out_specs=vmem,
        scratch_shapes=[
            pltpu.VMEM((ROWS, HID), jnp.float32),   # encx
            pltpu.VMEM((ROWS, HID), jnp.float32),   # decx
            pltpu.VMEM((ROWS, HID), jnp.float32),   # decoder hidden stack
        ],
    )(
        tok,
        params["emb"],
        params["w_ih"],
        params["e_b"], params["d_b"],
        params["e_whh"], params["d_whh"],
        params["w_out_p"], params["b_out_p"],
    )

    # slice off lane padding, restore PyTorch convention (batch, seq, vocab)
    logits = out2d[:, :VOCAB].reshape(SEQ, BATCH, VOCAB)
    return jnp.transpose(logits, (1, 0, 2))


# ----------------------------- param init ------------------------------------
def init_params(key):
    # NOTE: PyTorch nn.RNN has two biases (b_ih + b_hh) per cell; here a single
    # bias per cell is used (sum them when porting a checkpoint).
    keys = jax.random.split(key, 9)
    s = 0.1
    e_wih = s * jax.random.normal(keys[1], (EMB, HID), jnp.float32)
    d_wih = s * jax.random.normal(keys[4], (EMB, HID), jnp.float32)
    w_out = s * jax.random.normal(keys[7], (HID, VOCAB), jnp.float32)
    b_out = s * jax.random.normal(keys[8], (1, VOCAB), jnp.float32)
    return {
        "emb":   s * jax.random.normal(keys[0], (VOCAB, EMB), jnp.float32),
        # encoder|decoder input->hidden stacked: one MXU push in the kernel
        "w_ih":  jnp.concatenate([e_wih, d_wih], axis=1),          # (EMB, 2*HID)
        "e_whh": s * jax.random.normal(keys[2], (HID, HID), jnp.float32),
        "e_b":   s * jax.random.normal(keys[3], (1, HID), jnp.float32),
        "d_whh": s * jax.random.normal(keys[5], (HID, HID), jnp.float32),
        "d_b":   s * jax.random.normal(keys[6], (1, HID), jnp.float32),
        # output projection padded to a lane-dense 128-wide slab (zeros)
        "w_out_p": jnp.pad(w_out, ((0, 0), (0, VOCAB_PAD - VOCAB))),
        "b_out_p": jnp.pad(b_out, ((0, 0), (0, VOCAB_PAD - VOCAB))),
    }


if __name__ == "__main__":
    key = jax.random.PRNGKey(0)
    pkey, skey = jax.random.split(key)
    params = init_params(pkey)

    # source: (batch_size, seq_len) integer token ids
    source = jax.random.randint(skey, (BATCH, SEQ), 0, VOCAB, dtype=jnp.int32)

    outputs = seq2seq_forward(source, params)
    outputs = jax.block_until_ready(outputs)

    assert outputs.shape == (BATCH, SEQ, VOCAB), outputs.shape
    assert bool(jnp.all(jnp.isfinite(outputs)))

    print("KERNEL_OK")
</pallas_src>

<mosaic_0001>
module attributes {stable_mosaic.version = 11 : i64} {
  func.func @seq2seq_kernel(%arg0: memref<16x1xi32, #tpu.memory_space<vmem>>, %arg1: memref<16x32xf32, #tpu.memory_space<vmem>>, %arg2: memref<32x64xf32, #tpu.memory_space<vmem>>, %arg3: memref<1x32xf32, #tpu.memory_space<vmem>>, %arg4: memref<1x32xf32, #tpu.memory_space<vmem>>, %arg5: memref<32x32xf32, #tpu.memory_space<vmem>>, %arg6: memref<32x32xf32, #tpu.memory_space<vmem>>, %arg7: memref<32x128xf32, #tpu.memory_space<vmem>>, %arg8: memref<1x128xf32, #tpu.memory_space<vmem>>, %arg9: memref<16x128xf32, #tpu.memory_space<vmem>>, %arg10: memref<16x32xf32, #tpu.memory_space<vmem>>, %arg11: memref<16x32xf32, #tpu.memory_space<vmem>>, %arg12: memref<16x32xf32, #tpu.memory_space<vmem>>) attributes {dimension_semantics = [], scalar_prefetch = 0 : i64, scratch_operands = 3 : i64, tpu.core_type = #tpu.core_type<tc>} {
    %c0 = arith.constant 0 : index
    %c0_0 = arith.constant 0 : index
    %0 = vector.load %arg0[%c0, %c0_0] : memref<16x1xi32, #tpu.memory_space<vmem>>, vector<16x1xi32>
    %1 = tpu.iota {dimensions = array<i32: 1>} : vector<16x16xi32>
    %2 = vector.broadcast %0 : vector<16x1xi32> to vector<16x16xi32>
    %3 = arith.cmpi eq, %2, %1 : vector<16x16xi32>
    %4 = arith.extui %3 : vector<16x16xi1> to vector<16x16xi32>
    %5 = arith.sitofp %4 : vector<16x16xi32> to vector<16x16xf32>
    %c0_1 = arith.constant 0 : index
    %c0_2 = arith.constant 0 : index
    %6 = vector.load %arg1[%c0_1, %c0_2] : memref<16x32xf32, #tpu.memory_space<vmem>>, vector<16x32xf32>
    %cst = arith.constant dense<0.000000e+00> : vector<16x32xf32>
    %7 = tpu.matmul %5, %6, %cst {dimension_numbers = #tpu.dot_dimension_numbers<[1], [0], [0], [1], [0, 0, 1, 1], [], []>} : vector<16x16xf32>, vector<16x32xf32>, vector<16x32xf32> -> vector<16x32xf32>
    %c0_3 = arith.constant 0 : index
    %c0_4 = arith.constant 0 : index
    %8 = vector.load %arg2[%c0_3, %c0_4] : memref<32x64xf32, #tpu.memory_space<vmem>>, vector<32x64xf32>
    %cst_5 = arith.constant dense<0.000000e+00> : vector<16x64xf32>
    %9 = tpu.matmul %7, %8, %cst_5 {dimension_numbers = #tpu.dot_dimension_numbers<[1], [0], [0], [1], [0, 0, 1, 1], [], []>} : vector<16x32xf32>, vector<32x64xf32>, vector<16x64xf32> -> vector<16x64xf32>
    %10 = vector.extract_strided_slice %9 {offsets = [0, 0], sizes = [16, 32], strides = [1, 1]} : vector<16x64xf32> to vector<16x32xf32>
    %c0_6 = arith.constant 0 : index
    %c0_7 = arith.constant 0 : index
    %11 = vector.load %arg3[%c0_6, %c0_7] : memref<1x32xf32, #tpu.memory_space<vmem>>, vector<1x32xf32>
    %12 = vector.broadcast %11 : vector<1x32xf32> to vector<16x32xf32>
    %13 = arith.addf %10, %12 : vector<16x32xf32>
    %c0_8 = arith.constant 0 : index
    %c0_9 = arith.constant 0 : index
    %14 = vector.load %arg10[%c0_8, %c0_9] : memref<16x32xf32, #tpu.memory_space<vmem>>, vector<16x32xf32>
    tpu.vector_store %arg10[%c0_8, %c0_9], %13 {strides = array<i32>} : memref<16x32xf32, #tpu.memory_space<vmem>>, vector<16x32xf32>,
    %15 = vector.extract_strided_slice %9 {offsets = [0, 32], sizes = [16, 32], strides = [1, 1]} : vector<16x64xf32> to vector<16x32xf32>
    %c0_10 = arith.constant 0 : index
    %c0_11 = arith.constant 0 : index
    %16 = vector.load %arg4[%c0_10, %c0_11] : memref<1x32xf32, #tpu.memory_space<vmem>>, vector<1x32xf32>
    %17 = vector.broadcast %16 : vector<1x32xf32> to vector<16x32xf32>
    %18 = arith.addf %15, %17 : vector<16x32xf32>
    %c0_12 = arith.constant 0 : index
    %c0_13 = arith.constant 0 : index
    %19 = vector.load %arg11[%c0_12, %c0_13] : memref<16x32xf32, #tpu.memory_space<vmem>>, vector<16x32xf32>
    tpu.vector_store %arg11[%c0_12, %c0_13], %18 {strides = array<i32>} : memref<16x32xf32, #tpu.memory_space<vmem>>, vector<16x32xf32>,
    %c0_14 = arith.constant 0 : index
    %c0_15 = arith.constant 0 : index
    %20 = vector.load %arg5[%c0_14, %c0_15] : memref<32x32xf32, #tpu.memory_space<vmem>>, vector<32x32xf32>
    %c0_16 = arith.constant 0 : index
    %c0_17 = arith.constant 0 : index
    %21 = vector.load %arg6[%c0_16, %c0_17] : memref<32x32xf32, #tpu.memory_space<vmem>>, vector<32x32xf32>
    %cst_18 = arith.constant 0.000000e+00 : f32
    %22 = vector.broadcast %cst_18 : f32 to vector<2x32xf32>
    %c0_i32 = arith.constant 0 : i32
    %c2_i32 = arith.constant 2 : i32
    %23 = arith.muli %c0_i32, %c2_i32 : i32
    %24 = arith.index_cast %23 : i32 to index
    %c0_19 = arith.constant 0 : index
    %25 = vector.load %arg10[%24, %c0_19] : memref<16x32xf32, #tpu.memory_space<vmem>>, vector<2x32xf32>
    %cst_20 = arith.constant dense<0.000000e+00> : vector<2x32xf32>
    %26 = tpu.matmul %22, %20, %cst_20 {dimension_numbers = #tpu.dot_dimension_numbers<[1], [0], [0], [1], [0, 0, 1, 1], [], []>} : vector<2x32xf32>, vector<32x32xf32>, vector<2x32xf32> -> vector<2x32xf32>
    %27 = arith.addf %25, %26 : vector<2x32xf32>
    %28 = math.tanh %27 : vector<2x32xf32>
    %c1_i32 = arith.constant 1 : i32
    %c2_i32_21 = arith.constant 2 : i32
    %29 = arith.muli %c1_i32, %c2_i32_21 : i32
    %30 = arith.index_cast %29 : i32 to index
    %c0_22 = arith.constant 0 : index
    %31 = vector.load %arg10[%30, %c0_22] : memref<16x32xf32, #tpu.memory_space<vmem>>, vector<2x32xf32>
    %cst_23 = arith.constant dense<0.000000e+00> : vector<2x32xf32>
    %32 = tpu.matmul %28, %20, %cst_23 {dimension_numbers = #tpu.dot_dimension_numbers<[1], [0], [0], [1], [0, 0, 1, 1], [], []>} : vector<2x32xf32>, vector<32x32xf32>, vector<2x32xf32> -> vector<2x32xf32>
    %33 = arith.addf %31, %32 : vector<2x32xf32>
    %34 = math.tanh %33 : vector<2x32xf32>
    %c2_i32_24 = arith.constant 2 : i32
    %c2_i32_25 = arith.constant 2 : i32
    %35 = arith.muli %c2_i32_24, %c2_i32_25 : i32
    %36 = arith.index_cast %35 : i32 to index
    %c0_26 = arith.constant 0 : index
    %37 = vector.load %arg10[%36, %c0_26] : memref<16x32xf32, #tpu.memory_space<vmem>>, vector<2x32xf32>
    %cst_27 = arith.constant dense<0.000000e+00> : vector<2x32xf32>
    %38 = tpu.matmul %34, %20, %cst_27 {dimension_numbers = #tpu.dot_dimension_numbers<[1], [0], [0], [1], [0, 0, 1, 1], [], []>} : vector<2x32xf32>, vector<32x32xf32>, vector<2x32xf32> -> vector<2x32xf32>
    %39 = arith.addf %37, %38 : vector<2x32xf32>
    %40 = math.tanh %39 : vector<2x32xf32>
    %c3_i32 = arith.constant 3 : i32
    %c2_i32_28 = arith.constant 2 : i32
    %41 = arith.muli %c3_i32, %c2_i32_28 : i32
    %42 = arith.index_cast %41 : i32 to index
    %c0_29 = arith.constant 0 : index
    %43 = vector.load %arg10[%42, %c0_29] : memref<16x32xf32, #tpu.memory_space<vmem>>, vector<2x32xf32>
    %cst_30 = arith.constant dense<0.000000e+00> : vector<2x32xf32>
    %44 = tpu.matmul %40, %20, %cst_30 {dimension_numbers = #tpu.dot_dimension_numbers<[1], [0], [0], [1], [0, 0, 1, 1], [], []>} : vector<2x32xf32>, vector<32x32xf32>, vector<2x32xf32> -> vector<2x32xf32>
    %45 = arith.addf %43, %44 : vector<2x32xf32>
    %46 = math.tanh %45 : vector<2x32xf32>
    %c4_i32 = arith.constant 4 : i32
    %c2_i32_31 = arith.constant 2 : i32
    %47 = arith.muli %c4_i32, %c2_i32_31 : i32
    %48 = arith.index_cast %47 : i32 to index
    %c0_32 = arith.constant 0 : index
    %49 = vector.load %arg10[%48, %c0_32] : memref<16x32xf32, #tpu.memory_space<vmem>>, vector<2x32xf32>
    %cst_33 = arith.constant dense<0.000000e+00> : vector<2x32xf32>
    %50 = tpu.matmul %46, %20, %cst_33 {dimension_numbers = #tpu.dot_dimension_numbers<[1], [0], [0], [1], [0, 0, 1, 1], [], []>} : vector<2x32xf32>, vector<32x32xf32>, vector<2x32xf32> -> vector<2x32xf32>
    %51 = arith.addf %49, %50 : vector<2x32xf32>
    %52 = math.tanh %51 : vector<2x32xf32>
    %c5_i32 = arith.constant 5 : i32
    %c2_i32_34 = arith.constant 2 : i32
    %53 = arith.muli %c5_i32, %c2_i32_34 : i32
    %54 = arith.index_cast %53 : i32 to index
    %c0_35 = arith.constant 0 : index
    %55 = vector.load %arg10[%54, %c0_35] : memref<16x32xf32, #tpu.memory_space<vmem>>, vector<2x32xf32>
    %cst_36 = arith.constant dense<0.000000e+00> : vector<2x32xf32>
    %56 = tpu.matmul %52, %20, %cst_36 {dimension_numbers = #tpu.dot_dimension_numbers<[1], [0], [0], [1], [0, 0, 1, 1], [], []>} : vector<2x32xf32>, vector<32x32xf32>, vector<2x32xf32> -> vector<2x32xf32>
    %57 = arith.addf %55, %56 : vector<2x32xf32>
    %58 = math.tanh %57 : vector<2x32xf32>
    %c6_i32 = arith.constant 6 : i32
    %c2_i32_37 = arith.constant 2 : i32
    %59 = arith.muli %c6_i32, %c2_i32_37 : i32
    %60 = arith.index_cast %59 : i32 to index
    %c0_38 = arith.constant 0 : index
    %61 = vector.load %arg10[%60, %c0_38] : memref<16x32xf32, #tpu.memory_space<vmem>>, vector<2x32xf32>
    %cst_39 = arith.constant dense<0.000000e+00> : vector<2x32xf32>
    %62 = tpu.matmul %58, %20, %cst_39 {dimension_numbers = #tpu.dot_dimension_numbers<[1], [0], [0], [1], [0, 0, 1, 1], [], []>} : vector<2x32xf32>, vector<32x32xf32>, vector<2x32xf32> -> vector<2x32xf32>
    %63 = arith.addf %61, %62 : vector<2x32xf32>
    %64 = math.tanh %63 : vector<2x32xf32>
    %c7_i32 = arith.constant 7 : i32
    %c2_i32_40 = arith.constant 2 : i32
    %65 = arith.muli %c7_i32, %c2_i32_40 : i32
    %66 = arith.index_cast %65 : i32 to index
    %c0_41 = arith.constant 0 : index
    %67 = vector.load %arg10[%66, %c0_41] : memref<16x32xf32, #tpu.memory_space<vmem>>, vector<2x32xf32>
    %cst_42 = arith.constant dense<0.000000e+00> : vector<2x32xf32>
    %68 = tpu.matmul %64, %20, %cst_42 {dimension_numbers = #tpu.dot_dimension_numbers<[1], [0], [0], [1], [0, 0, 1, 1], [], []>} : vector<2x32xf32>, vector<32x32xf32>, vector<2x32xf32> -> vector<2x32xf32>
    %69 = arith.addf %67, %68 : vector<2x32xf32>
    %70 = math.tanh %69 : vector<2x32xf32>
    %c8_i32 = arith.constant 8 : i32
    %c0_i32_43 = arith.constant 0 : i32
    %c2_i32_44 = arith.constant 2 : i32
    %71 = arith.muli %c0_i32_43, %c2_i32_44 : i32
    %72 = arith.index_cast %71 : i32 to index
    %c0_45 = arith.constant 0 : index
    %73 = vector.load %arg11[%72, %c0_45] : memref<16x32xf32, #tpu.memory_space<vmem>>, vector<2x32xf32>
    %cst_46 = arith.constant dense<0.000000e+00> : vector<2x32xf32>
    %74 = tpu.matmul %70, %21, %cst_46 {dimension_numbers = #tpu.dot_dimension_numbers<[1], [0], [0], [1], [0, 0, 1, 1], [], []>} : vector<2x32xf32>, vector<32x32xf32>, vector<2x32xf32> -> vector<2x32xf32>
    %75 = arith.addf %73, %74 : vector<2x32xf32>
    %76 = math.tanh %75 : vector<2x32xf32>
    %c2_i32_47 = arith.constant 2 : i32
    %77 = arith.muli %c0_i32_43, %c2_i32_47 : i32
    %78 = arith.index_cast %77 : i32 to index
    %c0_48 = arith.constant 0 : index
    %79 = vector.load %arg12[%78, %c0_48] : memref<16x32xf32, #tpu.memory_space<vmem>>, vector<2x32xf32>
    tpu.vector_store %arg12[%78, %c0_48], %76 {strides = array<i32>} : memref<16x32xf32, #tpu.memory_space<vmem>>, vector<2x32xf32>,
    %c1_i32_49 = arith.constant 1 : i32
    %c2_i32_50 = arith.constant 2 : i32
    %80 = arith.muli %c1_i32_49, %c2_i32_50 : i32
    %81 = arith.index_cast %80 : i32 to index
    %c0_51 = arith.constant 0 : index
    %82 = vector.load %arg11[%81, %c0_51] : memref<16x32xf32, #tpu.memory_space<vmem>>, vector<2x32xf32>
    %cst_52 = arith.constant dense<0.000000e+00> : vector<2x32xf32>
    %83 = tpu.matmul %76, %21, %cst_52 {dimension_numbers = #tpu.dot_dimension_numbers<[1], [0], [0], [1], [0, 0, 1, 1], [], []>} : vector<2x32xf32>, vector<32x32xf32>, vector<2x32xf32> -> vector<2x32xf32>
    %84 = arith.addf %82, %83 : vector<2x32xf32>
    %85 = math.tanh %84 : vector<2x32xf32>
    %c2_i32_53 = arith.constant 2 : i32
    %86 = arith.muli %c1_i32_49, %c2_i32_53 : i32
    %87 = arith.index_cast %86 : i32 to index
    %c0_54 = arith.constant 0 : index
    %88 = vector.load %arg12[%87, %c0_54] : memref<16x32xf32, #tpu.memory_space<vmem>>, vector<2x32xf32>
    tpu.vector_store %arg12[%87, %c0_54], %85 {strides = array<i32>} : memref<16x32xf32, #tpu.memory_space<vmem>>, vector<2x32xf32>,
    %c2_i32_55 = arith.constant 2 : i32
    %c2_i32_56 = arith.constant 2 : i32
    %89 = arith.muli %c2_i32_55, %c2_i32_56 : i32
    %90 = arith.index_cast %89 : i32 to index
    %c0_57 = arith.constant 0 : index
    %91 = vector.load %arg11[%90, %c0_57] : memref<16x32xf32, #tpu.memory_space<vmem>>, vector<2x32xf32>
    %cst_58 = arith.constant dense<0.000000e+00> : vector<2x32xf32>
    %92 = tpu.matmul %85, %21, %cst_58 {dimension_numbers = #tpu.dot_dimension_numbers<[1], [0], [0], [1], [0, 0, 1, 1], [], []>} : vector<2x32xf32>, vector<32x32xf32>, vector<2x32xf32> -> vector<2x32xf32>
    %93 = arith.addf %91, %92 : vector<2x32xf32>
    %94 = math.tanh %93 : vector<2x32xf32>
    %c2_i32_59 = arith.constant 2 : i32
    %95 = arith.muli %c2_i32_55, %c2_i32_59 : i32
    %96 = arith.index_cast %95 : i32 to index
    %c0_60 = arith.constant 0 : index
    %97 = vector.load %arg12[%96, %c0_60] : memref<16x32xf32, #tpu.memory_space<vmem>>, vector<2x32xf32>
    tpu.vector_store %arg12[%96, %c0_60], %94 {strides = array<i32>} : memref<16x32xf32, #tpu.memory_space<vmem>>, vector<2x32xf32>,
    %c3_i32_61 = arith.constant 3 : i32
    %c2_i32_62 = arith.constant 2 : i32
    %98 = arith.muli %c3_i32_61, %c2_i32_62 : i32
    %99 = arith.index_cast %98 : i32 to index
    %c0_63 = arith.constant 0 : index
    %100 = vector.load %arg11[%99, %c0_63] : memref<16x32xf32, #tpu.memory_space<vmem>>, vector<2x32xf32>
    %cst_64 = arith.constant dense<0.000000e+00> : vector<2x32xf32>
    %101 = tpu.matmul %94, %21, %cst_64 {dimension_numbers = #tpu.dot_dimension_numbers<[1], [0], [0], [1], [0, 0, 1, 1], [], []>} : vector<2x32xf32>, vector<32x32xf32>, vector<2x32xf32> -> vector<2x32xf32>
    %102 = arith.addf %100, %101 : vector<2x32xf32>
    %103 = math.tanh %102 : vector<2x32xf32>
    %c2_i32_65 = arith.constant 2 : i32
    %104 = arith.muli %c3_i32_61, %c2_i32_65 : i32
    %105 = arith.index_cast %104 : i32 to index
    %c0_66 = arith.constant 0 : index
    %106 = vector.load %arg12[%105, %c0_66] : memref<16x32xf32, #tpu.memory_space<vmem>>, vector<2x32xf32>
    tpu.vector_store %arg12[%105, %c0_66], %103 {strides = array<i32>} : memref<16x32xf32, #tpu.memory_space<vmem>>, vector<2x32xf32>,
    %c4_i32_67 = arith.constant 4 : i32
    %c2_i32_68 = arith.constant 2 : i32
    %107 = arith.muli %c4_i32_67, %c2_i32_68 : i32
    %108 = arith.index_cast %107 : i32 to index
    %c0_69 = arith.constant 0 : index
    %109 = vector.load %arg11[%108, %c0_69] : memref<16x32xf32, #tpu.memory_space<vmem>>, vector<2x32xf32>
    %cst_70 = arith.constant dense<0.000000e+00> : vector<2x32xf32>
    %110 = tpu.matmul %103, %21, %cst_70 {dimension_numbers = #tpu.dot_dimension_numbers<[1], [0], [0], [1], [0, 0, 1, 1], [], []>} : vector<2x32xf32>, vector<32x32xf32>, vector<2x32xf32> -> vector<2x32xf32>
    %111 = arith.addf %109, %110 : vector<2x32xf32>
    %112 = math.tanh %111 : vector<2x32xf32>
    %c2_i32_71 = arith.constant 2 : i32
    %113 = arith.muli %c4_i32_67, %c2_i32_71 : i32
    %114 = arith.index_cast %113 : i32 to index
    %c0_72 = arith.constant 0 : index
    %115 = vector.load %arg12[%114, %c0_72] : memref<16x32xf32, #tpu.memory_space<vmem>>, vector<2x32xf32>
    tpu.vector_store %arg12[%114, %c0_72], %112 {strides = array<i32>} : memref<16x32xf32, #tpu.memory_space<vmem>>, vector<2x32xf32>,
    %c5_i32_73 = arith.constant 5 : i32
    %c2_i32_74 = arith.constant 2 : i32
    %116 = arith.muli %c5_i32_73, %c2_i32_74 : i32
    %117 = arith.index_cast %116 : i32 to index
    %c0_75 = arith.constant 0 : index
    %118 = vector.load %arg11[%117, %c0_75] : memref<16x32xf32, #tpu.memory_space<vmem>>, vector<2x32xf32>
    %cst_76 = arith.constant dense<0.000000e+00> : vector<2x32xf32>
    %119 = tpu.matmul %112, %21, %cst_76 {dimension_numbers = #tpu.dot_dimension_numbers<[1], [0], [0], [1], [0, 0, 1, 1], [], []>} : vector<2x32xf32>, vector<32x32xf32>, vector<2x32xf32> -> vector<2x32xf32>
    %120 = arith.addf %118, %119 : vector<2x32xf32>
    %121 = math.tanh %120 : vector<2x32xf32>
    %c2_i32_77 = arith.constant 2 : i32
    %122 = arith.muli %c5_i32_73, %c2_i32_77 : i32
    %123 = arith.index_cast %122 : i32 to index
    %c0_78 = arith.constant 0 : index
    %124 = vector.load %arg12[%123, %c0_78] : memref<16x32xf32, #tpu.memory_space<vmem>>, vector<2x32xf32>
    tpu.vector_store %arg12[%123, %c0_78], %121 {strides = array<i32>} : memref<16x32xf32, #tpu.memory_space<vmem>>, vector<2x32xf32>,
    %c6_i32_79 = arith.constant 6 : i32
    %c2_i32_80 = arith.constant 2 : i32
    %125 = arith.muli %c6_i32_79, %c2_i32_80 : i32
    %126 = arith.index_cast %125 : i32 to index
    %c0_81 = arith.constant 0 : index
    %127 = vector.load %arg11[%126, %c0_81] : memref<16x32xf32, #tpu.memory_space<vmem>>, vector<2x32xf32>
    %cst_82 = arith.constant dense<0.000000e+00> : vector<2x32xf32>
    %128 = tpu.matmul %121, %21, %cst_82 {dimension_numbers = #tpu.dot_dimension_numbers<[1], [0], [0], [1], [0, 0, 1, 1], [], []>} : vector<2x32xf32>, vector<32x32xf32>, vector<2x32xf32> -> vector<2x32xf32>
    %129 = arith.addf %127, %128 : vector<2x32xf32>
    %130 = math.tanh %129 : vector<2x32xf32>
    %c2_i32_83 = arith.constant 2 : i32
    %131 = arith.muli %c6_i32_79, %c2_i32_83 : i32
    %132 = arith.index_cast %131 : i32 to index
    %c0_84 = arith.constant 0 : index
    %133 = vector.load %arg12[%132, %c0_84] : memref<16x32xf32, #tpu.memory_space<vmem>>, vector<2x32xf32>
    tpu.vector_store %arg12[%132, %c0_84], %130 {strides = array<i32>} : memref<16x32xf32, #tpu.memory_space<vmem>>, vector<2x32xf32>,
    %c7_i32_85 = arith.constant 7 : i32
    %c2_i32_86 = arith.constant 2 : i32
    %134 = arith.muli %c7_i32_85, %c2_i32_86 : i32
    %135 = arith.index_cast %134 : i32 to index
    %c0_87 = arith.constant 0 : index
    %136 = vector.load %arg11[%135, %c0_87] : memref<16x32xf32, #tpu.memory_space<vmem>>, vector<2x32xf32>
    %cst_88 = arith.constant dense<0.000000e+00> : vector<2x32xf32>
    %137 = tpu.matmul %130, %21, %cst_88 {dimension_numbers = #tpu.dot_dimension_numbers<[1], [0], [0], [1], [0, 0, 1, 1], [], []>} : vector<2x32xf32>, vector<32x32xf32>, vector<2x32xf32> -> vector<2x32xf32>
    %138 = arith.addf %136, %137 : vector<2x32xf32>
    %139 = math.tanh %138 : vector<2x32xf32>
    %c2_i32_89 = arith.constant 2 : i32
    %140 = arith.muli %c7_i32_85, %c2_i32_89 : i32
    %141 = arith.index_cast %140 : i32 to index
    %c0_90 = arith.constant 0 : index
    %142 = vector.load %arg12[%141, %c0_90] : memref<16x32xf32, #tpu.memory_space<vmem>>, vector<2x32xf32>
    tpu.vector_store %arg12[%141, %c0_90], %139 {strides = array<i32>} : memref<16x32xf32, #tpu.memory_space<vmem>>, vector<2x32xf32>,
    %c8_i32_91 = arith.constant 8 : i32
    %c0_92 = arith.constant 0 : index
    %c0_93 = arith.constant 0 : index
    %143 = vector.load %arg12[%c0_92, %c0_93] : memref<16x32xf32, #tpu.memory_space<vmem>>, vector<16x32xf32>
    %c0_94 = arith.constant 0 : index
    %c0_95 = arith.constant 0 : index
    %144 = vector.load %arg7[%c0_94, %c0_95] : memref<32x128xf32, #tpu.memory_space<vmem>>, vector<32x128xf32>
    %cst_96 = arith.constant dense<0.000000e+00> : vector<16x128xf32>
    %145 = tpu.matmul %143, %144, %cst_96 {dimension_numbers = #tpu.dot_dimension_numbers<[1], [0], [0], [1], [0, 0, 1, 1], [], []>} : vector<16x32xf32>, vector<32x128xf32>, vector<16x128xf32> -> vector<16x128xf32>
    %c0_97 = arith.constant 0 : index
    %c0_98 = arith.constant 0 : index
    %146 = vector.load %arg8[%c0_97, %c0_98] : memref<1x128xf32, #tpu.memory_space<vmem>>, vector<1x128xf32>
    %147 = vector.broadcast %146 : vector<1x128xf32> to vector<16x128xf32>
    %148 = arith.addf %145, %147 : vector<16x128xf32>
    %c0_99 = arith.constant 0 : index
    %c0_100 = arith.constant 0 : index
    %149 = vector.load %arg9[%c0_99, %c0_100] : memref<16x128xf32, #tpu.memory_space<vmem>>, vector<16x128xf32>
    tpu.vector_store %arg9[%c0_99, %c0_100], %148 {strides = array<i32>} : memref<16x128xf32, #tpu.memory_space<vmem>>, vector<16x128xf32>,
    return
  }
}

</mosaic_0001>

<llo_original>
// kernel: tpu_custom_call.1
$region0: #{tpu_custom_call.1}
  #allocation0 [shape = 'u32[]', space=smem, size = 0x4, offset = 0x4, fixed_abs, tag = 'smem constant byte address 0x4 - core index']
  #allocation1 [shape = 'u32[144,128]{1,0:T(1,128)}', space=vmem, size = 0x12000, scoped, tag = 'internal scratch']
  #allocation2 [shape = 'f32[16,32]{1,0:T(8,128)}', space=vmem, size = 0x2000, scoped, tag = 'scratch operand']
  #allocation3 [shape = 'f32[16,32]{1,0:T(8,128)}', space=vmem, size = 0x2000, scoped, tag = 'scratch operand']
  #allocation4 [shape = 'f32[16,32]{1,0:T(8,128)}', space=vmem, size = 0x2000, scoped, tag = 'scratch operand']
  %s0 = inlined_call_operand.vmem [shape: s32[16,1], index: 0, kind: input, shape index: {}]
  %s1 = inlined_call_operand.hbm [shape: f32[16,32], index: 1, kind: input, shape index: {}]
  %s2 = inlined_call_operand.hbm [shape: f32[32,64], index: 2, kind: input, shape index: {}]
  %s3 = inlined_call_operand.vmem [shape: f32[1,32], index: 3, kind: input, shape index: {}]
  %s4 = inlined_call_operand.vmem [shape: f32[1,32], index: 4, kind: input, shape index: {}]
  %s5 = inlined_call_operand.vmem [shape: f32[32,32], index: 5, kind: input, shape index: {}]
  %s6 = inlined_call_operand.hbm [shape: f32[32,32], index: 6, kind: input, shape index: {}]
  %s7 = inlined_call_operand.hbm [shape: f32[32,128], index: 7, kind: input, shape index: {}]
  %s8 = inlined_call_operand.vmem [shape: f32[1,128], index: 8, kind: input, shape index: {}]
  %s9 = inlined_call_operand.hbm [shape: f32[16,128], index: 9, kind: output, shape index: {}]
  %s10 = sld [smem:[#allocation0]]
  $region62: #{tpu_custom_call.1} parent=0
    _
  %s12 = ssub.s32 1, %s10
  %s13 = scalar_select 0, %s12, %s10
  $region1: #{tpu_custom_call.1} parent=0
    #allocation5 [shape = 'u8[8192]{0}', space=vmem, size = 0x2000, scoped, tag = 'input window, operand 1, single buffered']
    #allocation6 [shape = 's32[1]{0}', space=sflag, size = 0x4, scoped, tag = 'scoped memory for tpu_custom_call.1']
    #allocation7 [shape = 's32[1]{0}', space=sflag, size = 0x4, scoped, tag = 'scoped memory for tpu_custom_call.1']
    #allocation8 [shape = 'u8[16384]{0}', space=vmem, size = 0x4000, scoped, tag = 'input window, operand 2, single buffered']
    #allocation9 [shape = 's32[1]{0}', space=sflag, size = 0x4, scoped, tag = 'scoped memory for tpu_custom_call.1']
    #allocation10 [shape = 'u8[16384]{0}', space=vmem, size = 0x4000, scoped, tag = 'input window, operand 6, single buffered']
    #allocation11 [shape = 'u8[16384]{0}', space=vmem, size = 0x4000, scoped, tag = 'input window, operand 7, single buffered']
    #allocation12 [shape = 's32[1]{0}', space=sflag, size = 0x4, scoped, tag = 'scoped memory for tpu_custom_call.1']
    #allocation13 [shape = 'u8[8192]{0}', space=vmem, size = 0x2000, scoped, tag = 'output window, operand 0, single buffered']
    %14 = vsyncpa [#allocation6], 0
    %15 = vsyncpa [#allocation9], 0
    %16 = vsyncpa [#allocation12], 0
    %17 = vsyncpa [#allocation7], 0
    // Predicated region
    $region2: #{tpu_custom_call.1} parent=1 // pred_check
      _
    $region3: #{tpu_custom_call.1} parent=1 // pred_check_branch
      %19 = sbr.rel (0) target = $region5
    $region4: #{tpu_custom_call.1} parent=1 // pred_region
      _
    $region5: #{tpu_custom_call.1} parent=1 // pred_fallthru
      _
    // Predicated region
    $region6: #{tpu_custom_call.1} parent=1 // pred_check
      _
    $region7: #{tpu_custom_call.1} parent=1 // pred_check_branch
      %21 = sbr.rel (0) target = $region9
    $region8: #{tpu_custom_call.1} parent=1 // pred_region
      %s23 = ssub.s32 256, 256
      %24 = vsyncadd [#allocation6], %s23
      %s25 = sshll.u32 [#allocation5], 4
      %s26 = int_to_ptr.vmem [resolvable:$true] %s25
      %31 = dma.hbm_to_vmem [thread:$0]  %s1, 256, %s26, [#allocation6], 128, 128, 8
    $region9: #{tpu_custom_call.1} parent=1 // pred_fallthru
      _
    // Predicated region
    $region10: #{tpu_custom_call.1} parent=1 // pred_check
      _
    $region11: #{tpu_custom_call.1} parent=1 // pred_check_branch
      %33 = sbr.rel (0) target = $region13
    $region12: #{tpu_custom_call.1} parent=1 // pred_region
      %s35 = ssub.s32 512, 512
      %36 = vsyncadd [#allocation9], %s35
      %s37 = sshll.u32 [#allocation8], 4
      %s38 = int_to_ptr.vmem [resolvable:$true] %s37
      %43 = dma.hbm_to_vmem [thread:$0]  %s2, 512, %s38, [#allocation9], 128, 128, 8
    $region13: #{tpu_custom_call.1} parent=1 // pred_fallthru
      _
    // Predicated region
    $region14: #{tpu_custom_call.1} parent=1 // pred_check
      _
    $region15: #{tpu_custom_call.1} parent=1 // pred_check_branch
      %45 = sbr.rel (0) target = $region17
    $region16: #{tpu_custom_call.1} parent=1 // pred_region
      _
    $region17: #{tpu_custom_call.1} parent=1 // pred_fallthru
      _
    // Predicated region
    $region18: #{tpu_custom_call.1} parent=1 // pred_check
      _
    $region19: #{tpu_custom_call.1} parent=1 // pred_check_branch
      %47 = sbr.rel (0) target = $region21
    $region20: #{tpu_custom_call.1} parent=1 // pred_region
      _
    $region21: #{tpu_custom_call.1} parent=1 // pred_fallthru
      _
    // Predicated region
    $region22: #{tpu_custom_call.1} parent=1 // pred_check
      _
    $region23: #{tpu_custom_call.1} parent=1 // pred_check_branch
      %49 = sbr.rel (0) target = $region25
    $region24: #{tpu_custom_call.1} parent=1 // pred_region
      _
    $region25: #{tpu_custom_call.1} parent=1 // pred_fallthru
      _
    // Predicated region
    $region26: #{tpu_custom_call.1} parent=1 // pred_check
      _
    $region27: #{tpu_custom_call.1} parent=1 // pred_check_branch
      %51 = sbr.rel (0) target = $region29
    $region28: #{tpu_custom_call.1} parent=1 // pred_region
      %s53 = ssub.s32 512, 512
      %54 = vsyncadd [#allocation9], %s53
      %s55 = sshll.u32 [#allocation10], 4
      %s56 = int_to_ptr.vmem [resolvable:$true] %s55
      %61 = dma.hbm_to_vmem [thread:$0]  %s6, 512, %s56, [#allocation9], 128, 128, 8
    $region29: #{tpu_custom_call.1} parent=1 // pred_fallthru
      _
    // Predicated region
    $region30: #{tpu_custom_call.1} parent=1 // pred_check
      _
    $region31: #{tpu_custom_call.1} parent=1 // pred_check_branch
      %63 = sbr.rel (0) target = $region33
    $region32: #{tpu_custom_call.1} parent=1 // pred_region
      %s65 = ssub.s32 512, 512
      %66 = vsyncadd [#allocation12], %s65
      %s67 = sshll.u32 [#allocation11], 4
      %s68 = int_to_ptr.vmem [resolvable:$true] %s67
      %73 = dma.hbm_to_vmem [thread:$0]  %s7, 512, %s68, [#allocation12], 128, 128, 8
    $region33: #{tpu_custom_call.1} parent=1 // pred_fallthru
      _
    // Predicated region
    $region34: #{tpu_custom_call.1} parent=1 // pred_check
      _
    $region35: #{tpu_custom_call.1} parent=1 // pred_check_branch
      %75 = sbr.rel (0) target = $region37
    $region36: #{tpu_custom_call.1} parent=1 // pred_region
      _
    $region37: #{tpu_custom_call.1} parent=1 // pred_fallthru
      _
    // Predicated region
    $region38: #{tpu_custom_call.1} parent=1 // pred_check
      _
    $region39: #{tpu_custom_call.1} parent=1 // pred_check_branch
      %77 = sbr.rel (0) target = $region41
    $region40: #{tpu_custom_call.1} parent=1 // pred_region
      %78 = dma.done [#allocation6], 256
    $region41: #{tpu_custom_call.1} parent=1 // pred_fallthru
      _
    // Predicated region
    $region42: #{tpu_custom_call.1} parent=1 // pred_check
      _
    $region43: #{tpu_custom_call.1} parent=1 // pred_check_branch
      %80 = sbr.rel (0) target = $region45
    $region44: #{tpu_custom_call.1} parent=1 // pred_region
      %81 = dma.done [#allocation9], 512
    $region45: #{tpu_custom_call.1} parent=1 // pred_fallthru
      _
    // Predicated region
    $region46: #{tpu_custom_call.1} parent=1 // pred_check
      _
    $region47: #{tpu_custom_call.1} parent=1 // pred_check_branch
      %83 = sbr.rel (0) target = $region49
    $region48: #{tpu_custom_call.1} parent=1 // pred_region
      %84 = dma.done [#allocation9], 512
    $region49: #{tpu_custom_call.1} parent=1 // pred_fallthru
      _
    // Predicated region
    $region50: #{tpu_custom_call.1} parent=1 // pred_check
      _
    $region51: #{tpu_custom_call.1} parent=1 // pred_check_branch
      %86 = sbr.rel (0) target = $region53
    $region52: #{tpu_custom_call.1} parent=1 // pred_region
      %87 = dma.done [#allocation12], 512
    $region53: #{tpu_custom_call.1} parent=1 // pred_fallthru
      _
    %v88 = vld [vmem:[%s0] sm:$0xff]
    %v89 = vld [vmem:[%s0 + $0x8] sm:$0xff]
    %v90 = vlaneseq
    %v91 = vand.u32 %v90, 127
    %92 = vset.pattern.permute.xlu0 0
    %93 = vperm.xlu0 %92, %v88
    %v94 = vpop.permute.xlu0 %93
    %95 = vset.pattern.permute.xlu0 0
    %96 = vperm.xlu0 %95, %v89
    %v97 = vpop.permute.xlu0 %96
    %vm98 = vcmp.eq.s32.totalorder %v94, %v91
    %vm99 = vcmp.eq.s32.totalorder %v97, %v91
    %v100 = vsel %vm98, 1, 0
    %v101 = vsel %vm99, 1, 0
    %v102 = vcvt.s32.f32 %v100
    %v103 = vcvt.s32.f32 %v101
    %v104 = vld [vmem:[#allocation5] sm:$0xff]
    %v105 = vld [vmem:[#allocation5 + $0x8] sm:$0xff]
    %vm106 = vcmask 130048
    %v108 = vsel %vm106, %v102, 0
    %v111 = vsel %vm106, %v103, 0
    %113 = vmatprep.subr.mxu0 0.0
    %114 = vmatpush1.msra.mxu0 %v104
    %115 = vmatprep.subr.mxu0 0.0
    %116 = vmatpush1.msra.mxu0 %v105
    %117 = vmatprep.subr.mxu0 0.0
    %118 = vmatpush1.msra.mxu0 0.0
    %119 = vmatprep.subr.mxu0 0.0
    %120 = vmatpush1.msra.mxu0 0.0
    %121 = vmatprep.subr.mxu0 0.0
    %122 = vmatpush1.msra.mxu0 0.0
    %123 = vmatprep.subr.mxu0 0.0
    %124 = vmatpush1.msra.mxu0 0.0
    %125 = vmatprep.subr.mxu0 0.0
    %126 = vmatpush1.msra.mxu0 0.0
    %127 = vmatprep.subr.mxu0 0.0
    %128 = vmatpush1.msra.mxu0 0.0
    %129 = vmatprep.subr.mxu0 0.0
    %130 = vmatpush1.msra.mxu0 0.0
    %131 = vmatprep.subr.mxu0 0.0
    %132 = vmatpush1.msra.mxu0 0.0
    %133 = vmatprep.subr.mxu0 0.0
    %134 = vmatpush1.msra.mxu0 0.0
    %135 = vmatprep.subr.mxu0 0.0
    %136 = vmatpush1.msra.mxu0 0.0
    %137 = vmatprep.subr.mxu0 0.0
    %138 = vmatpush1.msra.mxu0 0.0
    %139 = vmatprep.subr.mxu0 0.0
    %140 = vmatpush1.msra.mxu0 0.0
    %141 = vmatprep.subr.mxu0 0.0
    %142 = vmatpush1.msra.mxu0 0.0
    %143 = vmatprep.subr.mxu0 0.0
    %144 = vmatpush1.msra.mxu0 0.0
    %145 = vmatprep.subr.mxu0 0.0
    %146 = vmatpush1.msra.mxu0 0.0
    %147 = vmatprep.subr.mxu0 0.0
    %148 = vmatpush1.msra.mxu0 0.0
    %149 = vmatprep.subr.mxu0 0.0
    %150 = vmatpush1.msra.mxu0 0.0
    %151 = vmatprep.subr.mxu0 0.0
    %152 = vmatpush1.msra.mxu0 0.0
    %153 = vmatprep.subr.mxu0 0.0
    %154 = vmatpush1.msra.mxu0 0.0
    %155 = vmatprep.subr.mxu0 0.0
    %156 = vmatpush1.msra.mxu0 0.0
    %157 = vmatprep.subr.mxu0 0.0
    %158 = vmatpush1.msra.mxu0 0.0
    %159 = vmatprep.subr.mxu0 0.0
    %160 = vmatpush1.msra.mxu0 0.0
    %161 = vmatprep.subr.mxu0 0.0
    %162 = vmatpush1.msra.mxu0 0.0
    %163 = vmatprep.subr.mxu0 0.0
    %164 = vmatpush1.msra.mxu0 0.0
    %165 = vmatprep.subr.mxu0 0.0
    %166 = vmatpush1.msra.mxu0 0.0
    %167 = vmatprep.subr.mxu0 0.0
    %168 = vmatpush1.msra.mxu0 0.0
    %169 = vmatprep.subr.mxu0 0.0
    %170 = vmatpush1.msra.mxu0 0.0
    %171 = vmatprep.subr.mxu0 0.0
    %172 = vmatpush1.msra.mxu0 0.0
    %173 = vmatprep.subr.mxu0 0.0
    %174 = vmatpush1.msra.mxu0 0.0
    %175 = vmatprep.subr.mxu0 0.0
    %176 = vmatpush1.msra.mxu0 0.0
    %177 = vmatprep.mubr.f32.mxu0 0.0
    %178 = vmatmul.mubr.f32.gmra.mrb[0].mxu0 %v108
    %v179 = vpop.f32.mrb[0].mxu0
    %v180 = vadd.f32 0.0, %v179
    %v181 = vpop.f32.mrb[0].mxu0
    %182 = vmatprep.mubr.f32.mxu0 0.0
    %183 = vmatmul.mubr.f32.gmra.mrb[0].mxu0 %v111
    %v184 = vpop.f32.mrb[0].mxu0
    %v185 = vadd.f32 0.0, %v184
    %v186 = vpop.f32.mrb[0].mxu0
    %187 = vdwg.mxu0
    %v188 = vld [vmem:[#allocation8] sm:$0xff]
    %v189 = vld [vmem:[#allocation8 + $0x8] sm:$0xff]
    %v190 = vld [vmem:[#allocation8 + $0x10] sm:$0xff]
    %v191 = vld [vmem:[#allocation8 + $0x18] sm:$0xff]
    %vm192 = vcmask 261120
    %v194 = vsel %vm192, %v180, 0
    %v197 = vsel %vm192, %v185, 0
    %199 = vmatprep.subr.mxu0 0.0
    %200 = vmatpush1.msra.mxu0 %v188
    %201 = vmatprep.subr.mxu0 0.0
    %202 = vmatpush1.msra.mxu0 %v189
    %203 = vmatprep.subr.mxu0 0.0
    %204 = vmatpush1.msra.mxu0 %v190
    %205 = vmatprep.subr.mxu0 0.0
    %206 = vmatpush1.msra.mxu0 %v191
    %207 = vmatprep.subr.mxu0 0.0
    %208 = vmatpush1.msra.mxu0 0.0
    %209 = vmatprep.subr.mxu0 0.0
    %210 = vmatpush1.msra.mxu0 0.0
    %211 = vmatprep.subr.mxu0 0.0
    %212 = vmatpush1.msra.mxu0 0.0
    %213 = vmatprep.subr.mxu0 0.0
    %214 = vmatpush1.msra.mxu0 0.0
    %215 = vmatprep.subr.mxu0 0.0
    %216 = vmatpush1.msra.mxu0 0.0
    %217 = vmatprep.subr.mxu0 0.0
    %218 = vmatpush1.msra.mxu0 0.0
    %219 = vmatprep.subr.mxu0 0.0
    %220 = vmatpush1.msra.mxu0 0.0
    %221 = vmatprep.subr.mxu0 0.0
    %222 = vmatpush1.msra.mxu0 0.0
    %223 = vmatprep.subr.mxu0 0.0
    %224 = vmatpush1.msra.mxu0 0.0
    %225 = vmatprep.subr.mxu0 0.0
    %226 = vmatpush1.msra.mxu0 0.0
    %227 = vmatprep.subr.mxu0 0.0
    %228 = vmatpush1.msra.mxu0 0.0
    %229 = vmatprep.subr.mxu0 0.0
    %230 = vmatpush1.msra.mxu0 0.0
    %231 = vmatprep.subr.mxu0 0.0
    %232 = vmatpush1.msra.mxu0 0.0
    %233 = vmatprep.subr.mxu0 0.0
    %234 = vmatpush1.msra.mxu0 0.0
    %235 = vmatprep.subr.mxu0 0.0
    %236 = vmatpush1.msra.mxu0 0.0
    %237 = vmatprep.subr.mxu0 0.0
    %238 = vmatpush1.msra.mxu0 0.0
    %239 = vmatprep.subr.mxu0 0.0
    %240 = vmatpush1.msra.mxu0 0.0
    %241 = vmatprep.subr.mxu0 0.0
    %242 = vmatpush1.msra.mxu0 0.0
    %243 = vmatprep.subr.mxu0 0.0
    %244 = vmatpush1.msra.mxu0 0.0
    %245 = vmatprep.subr.mxu0 0.0
    %246 = vmatpush1.msra.mxu0 0.0
    %247 = vmatprep.subr.mxu0 0.0
    %248 = vmatpush1.msra.mxu0 0.0
    %249 = vmatprep.subr.mxu0 0.0
    %250 = vmatpush1.msra.mxu0 0.0
    %251 = vmatprep.subr.mxu0 0.0
    %252 = vmatpush1.msra.mxu0 0.0
    %253 = vmatprep.subr.mxu0 0.0
    %254 = vmatpush1.msra.mxu0 0.0
    %255 = vmatprep.subr.mxu0 0.0
    %256 = vmatpush1.msra.mxu0 0.0
    %257 = vmatprep.subr.mxu0 0.0
    %258 = vmatpush1.msra.mxu0 0.0
    %259 = vmatprep.subr.mxu0 0.0
    %260 = vmatpush1.msra.mxu0 0.0
    %261 = vmatprep.subr.mxu0 0.0
    %262 = vmatpush1.msra.mxu0 0.0
    %263 = vmatprep.mubr.f32.mxu0 0.0
    %264 = vmatmul.mubr.f32.gmra.mrb[0].mxu0 %v194
    %v265 = vpop.f32.mrb[0].mxu0
    %v266 = vadd.f32 0.0, %v265
    %v267 = vpop.f32.mrb[0].mxu0
    %268 = vmatprep.mubr.f32.mxu0 0.0
    %269 = vmatmul.mubr.f32.gmra.mrb[0].mxu0 %v197
    %v270 = vpop.f32.mrb[0].mxu0
    %v271 = vadd.f32 0.0, %v270
    %v272 = vpop.f32.mrb[0].mxu0
    %273 = vdwg.mxu0
    %v274 = vld [vmem:[%s3] sm:$0x1]
    %v276 = vlaneseq
    %v277 = vshrl.u32 %v276, 7
    %v278 = vsub.s32 0, %v277
    %v279 = vrot.slane %v274, %v278
    %v281 = vadd.f32 %v266, %v279
    %v282 = vadd.f32 %v271, %v279
    %283 = vst.msk [vmem:[#allocation2] sm:$0xff] %vm192, %v281
    %284 = vst.msk [vmem:[#allocation2 + $0x8] sm:$0xff] %vm192, %v282
    %v285 = vld [vmem:[%s4] sm:$0x1]
    %v287 = vlaneseq
    %v288 = vshrl.u32 %v287, 7
    %v289 = vsub.s32 0, %v288
    %v290 = vrot.slane %v285, %v289
    %291 = vrot.lane.b32.xlu0 %v290, 32
    %v292 = vpop.permute.xlu0 %291
    %v294 = vadd.f32 %v266, %v292
    %v295 = vadd.f32 %v271, %v292
    %298 = vrot.lane.b32.xlu0 %v294, 96
    %v299 = vpop.permute.xlu0 %298
    %300 = vrot.lane.b32.xlu0 %v295, 96
    %v301 = vpop.permute.xlu0 %300
    %304 = vst.msk [vmem:[#allocation3] sm:$0xff] %vm192, %v299
    %305 = vst.msk [vmem:[#allocation3 + $0x8] sm:$0xff] %vm192, %v301
    %v306 = vld [vmem:[%s5] sm:$0xff]
    %v307 = vld [vmem:[%s5 + $0x8] sm:$0xff]
    %v308 = vld [vmem:[%s5 + $0x10] sm:$0xff]
    %v309 = vld [vmem:[%s5 + $0x18] sm:$0xff]
    %v310 = vld [vmem:[#allocation10] sm:$0xff]
    %v311 = vld [vmem:[#allocation10 + $0x8] sm:$0xff]
    %v312 = vld [vmem:[#allocation10 + $0x10] sm:$0xff]
    %v313 = vld [vmem:[#allocation10 + $0x18] sm:$0xff]
    %v314 = vld [vmem:[#allocation2] sm:$0x3]
    %v316 = vsel %vm192, 0.0, 0
    %318 = vmatprep.subr.mxu0 0.0
    %319 = vmatpush1.msra.mxu0 %v306
    %320 = vmatprep.subr.mxu0 0.0
    %321 = vmatpush1.msra.mxu0 %v307
    %322 = vmatprep.subr.mxu0 0.0
    %323 = vmatpush1.msra.mxu0 %v308
    %324 = vmatprep.subr.mxu0 0.0
    %325 = vmatpush1.msra.mxu0 %v309
    %326 = vmatprep.subr.mxu0 0.0
    %327 = vmatpush1.msra.mxu0 0.0
    %328 = vmatprep.subr.mxu0 0.0
    %329 = vmatpush1.msra.mxu0 0.0
    %330 = vmatprep.subr.mxu0 0.0
    %331 = vmatpush1.msra.mxu0 0.0
    %332 = vmatprep.subr.mxu0 0.0
    %333 = vmatpush1.msra.mxu0 0.0
    %334 = vmatprep.subr.mxu0 0.0
    %335 = vmatpush1.msra.mxu0 0.0
    %336 = vmatprep.subr.mxu0 0.0
    %337 = vmatpush1.msra.mxu0 0.0
    %338 = vmatprep.subr.mxu0 0.0
    %339 = vmatpush1.msra.mxu0 0.0
    %340 = vmatprep.subr.mxu0 0.0
    %341 = vmatpush1.msra.mxu0 0.0
    %342 = vmatprep.subr.mxu0 0.0
    %343 = vmatpush1.msra.mxu0 0.0
    %344 = vmatprep.subr.mxu0 0.0
    %345 = vmatpush1.msra.mxu0 0.0
    %346 = vmatprep.subr.mxu0 0.0
    %347 = vmatpush1.msra.mxu0 0.0
    %348 = vmatprep.subr.mxu0 0.0
    %349 = vmatpush1.msra.mxu0 0.0
    %350 = vmatprep.subr.mxu0 0.0
    %351 = vmatpush1.msra.mxu0 0.0
    %352 = vmatprep.subr.mxu0 0.0
    %353 = vmatpush1.msra.mxu0 0.0
    %354 = vmatprep.subr.mxu0 0.0
    %355 = vmatpush1.msra.mxu0 0.0
    %356 = vmatprep.subr.mxu0 0.0
    %357 = vmatpush1.msra.mxu0 0.0
    %358 = vmatprep.subr.mxu0 0.0
    %359 = vmatpush1.msra.mxu0 0.0
    %360 = vmatprep.subr.mxu0 0.0
    %361 = vmatpush1.msra.mxu0 0.0
    %362 = vmatprep.subr.mxu0 0.0
    %363 = vmatpush1.msra.mxu0 0.0
    %364 = vmatprep.subr.mxu0 0.0
    %365 = vmatpush1.msra.mxu0 0.0
    %366 = vmatprep.subr.mxu0 0.0
    %367 = vmatpush1.msra.mxu0 0.0
    %368 = vmatprep.subr.mxu0 0.0
    %369 = vmatpush1.msra.mxu0 0.0
    %370 = vmatprep.subr.mxu0 0.0
    %371 = vmatpush1.msra.mxu0 0.0
    %372 = vmatprep.subr.mxu0 0.0
    %373 = vmatpush1.msra.mxu0 0.0
    %374 = vmatprep.subr.mxu0 0.0
    %375 = vmatpush1.msra.mxu0 0.0
    %376 = vmatprep.subr.mxu0 0.0
    %377 = vmatpush1.msra.mxu0 0.0
    %378 = vmatprep.subr.mxu0 0.0
    %379 = vmatpush1.msra.mxu0 0.0
    %380 = vmatprep.subr.mxu0 0.0
    %381 = vmatpush1.msra.mxu0 0.0
    %382 = vmatprep.mubr.f32.mxu0 0.0
    %383 = vmatmul.mubr.f32.gmra.mrb[0].mxu0 %v316
    %v384 = vpop.f32.mrb[0].mxu0
    %v385 = vadd.f32 0.0, %v384
    %v386 = vpop.f32.mrb[0].mxu0
    %387 = vdwg.mxu0
    %v388 = vadd.f32 %v314, %v385
    %v389 = vtanh.pop %v388
    %v390 = vld [vmem:[#allocation2 + $0x2] sm:$0x3]
    %v392 = vsel %vm192, %v389, 0
    %394 = vmatprep.subr.mxu0 0.0
    %395 = vmatpush1.msra.mxu0 %v306
    %396 = vmatprep.subr.mxu0 0.0
    %397 = vmatpush1.msra.mxu0 %v307
    %398 = vmatprep.subr.mxu0 0.0
    %399 = vmatpush1.msra.mxu0 %v308
    %400 = vmatprep.subr.mxu0 0.0
    %401 = vmatpush1.msra.mxu0 %v309
    %402 = vmatprep.subr.mxu0 0.0
    %403 = vmatpush1.msra.mxu0 0.0
    %404 = vmatprep.subr.mxu0 0.0
    %405 = vmatpush1.msra.mxu0 0.0
    %406 = vmatprep.subr.mxu0 0.0
    %407 = vmatpush1.msra.mxu0 0.0
    %408 = vmatprep.subr.mxu0 0.0
    %409 = vmatpush1.msra.mxu0 0.0
    %410 = vmatprep.subr.mxu0 0.0
    %411 = vmatpush1.msra.mxu0 0.0
    %412 = vmatprep.subr.mxu0 0.0
    %413 = vmatpush1.msra.mxu0 0.0
    %414 = vmatprep.subr.mxu0 0.0
    %415 = vmatpush1.msra.mxu0 0.0
    %416 = vmatprep.subr.mxu0 0.0
    %417 = vmatpush1.msra.mxu0 0.0
    %418 = vmatprep.subr.mxu0 0.0
    %419 = vmatpush1.msra.mxu0 0.0
    %420 = vmatprep.subr.mxu0 0.0
    %421 = vmatpush1.msra.mxu0 0.0
    %422 = vmatprep.subr.mxu0 0.0
    %423 = vmatpush1.msra.mxu0 0.0
    %424 = vmatprep.subr.mxu0 0.0
    %425 = vmatpush1.msra.mxu0 0.0
    %426 = vmatprep.subr.mxu0 0.0
    %427 = vmatpush1.msra.mxu0 0.0
    %428 = vmatprep.subr.mxu0 0.0
    %429 = vmatpush1.msra.mxu0 0.0
    %430 = vmatprep.subr.mxu0 0.0
    %431 = vmatpush1.msra.mxu0 0.0
    %432 = vmatprep.subr.mxu0 0.0
    %433 = vmatpush1.msra.mxu0 0.0
    %434 = vmatprep.subr.mxu0 0.0
    %435 = vmatpush1.msra.mxu0 0.0
    %436 = vmatprep.subr.mxu0 0.0
    %437 = vmatpush1.msra.mxu0 0.0
    %438 = vmatprep.subr.mxu0 0.0
    %439 = vmatpush1.msra.mxu0 0.0
    %440 = vmatprep.subr.mxu0 0.0
    %441 = vmatpush1.msra.mxu0 0.0
    %442 = vmatprep.subr.mxu0 0.0
    %443 = vmatpush1.msra.mxu0 0.0
    %444 = vmatprep.subr.mxu0 0.0
    %445 = vmatpush1.msra.mxu0 0.0
    %446 = vmatprep.subr.mxu0 0.0
    %447 = vmatpush1.msra.mxu0 0.0
    %448 = vmatprep.subr.mxu0 0.0
    %449 = vmatpush1.msra.mxu0 0.0
    %450 = vmatprep.subr.mxu0 0.0
    %451 = vmatpush1.msra.mxu0 0.0
    %452 = vmatprep.subr.mxu0 0.0
    %453 = vmatpush1.msra.mxu0 0.0
    %454 = vmatprep.subr.mxu0 0.0
    %455 = vmatpush1.msra.mxu0 0.0
    %456 = vmatprep.subr.mxu0 0.0
    %457 = vmatpush1.msra.mxu0 0.0
    %458 = vmatprep.mubr.f32.mxu0 0.0
    %459 = vmatmul.mubr.f32.gmra.mrb[0].mxu0 %v392
    %v460 = vpop.f32.mrb[0].mxu0
    %v461 = vadd.f32 0.0, %v460
    %v462 = vpop.f32.mrb[0].mxu0
    %463 = vdwg.mxu0
    %v464 = vadd.f32 %v390, %v461
    %v465 = vtanh.pop %v464
    %v466 = vld [vmem:[#allocation2 + $0x4] sm:$0x3]
    %v468 = vsel %vm192, %v465, 0
    %470 = vmatprep.subr.mxu0 0.0
    %471 = vmatpush1.msra.mxu0 %v306
    %472 = vmatprep.subr.mxu0 0.0
    %473 = vmatpush1.msra.mxu0 %v307
    %474 = vmatprep.subr.mxu0 0.0
    %475 = vmatpush1.msra.mxu0 %v308
    %476 = vmatprep.subr.mxu0 0.0
    %477 = vmatpush1.msra.mxu0 %v309
    %478 = vmatprep.subr.mxu0 0.0
    %479 = vmatpush1.msra.mxu0 0.0
    %480 = vmatprep.subr.mxu0 0.0
    %481 = vmatpush1.msra.mxu0 0.0
    %482 = vmatprep.subr.mxu0 0.0
    %483 = vmatpush1.msra.mxu0 0.0
    %484 = vmatprep.subr.mxu0 0.0
    %485 = vmatpush1.msra.mxu0 0.0
    %486 = vmatprep.subr.mxu0 0.0
    %487 = vmatpush1.msra.mxu0 0.0
    %488 = vmatprep.subr.mxu0 0.0
    %489 = vmatpush1.msra.mxu0 0.0
    %490 = vmatprep.subr.mxu0 0.0
    %491 = vmatpush1.msra.mxu0 0.0
    %492 = vmatprep.subr.mxu0 0.0
    %493 = vmatpush1.msra.mxu0 0.0
    %494 = vmatprep.subr.mxu0 0.0
    %495 = vmatpush1.msra.mxu0 0.0
    %496 = vmatprep.subr.mxu0 0.0
    %497 = vmatpush1.msra.mxu0 0.0
    %498 = vmatprep.subr.mxu0 0.0
    %499 = vmatpush1.msra.mxu0 0.0
    %500 = vmatprep.subr.mxu0 0.0
    %501 = vmatpush1.msra.mxu0 0.0
    %502 = vmatprep.subr.mxu0 0.0
    %503 = vmatpush1.msra.mxu0 0.0
    %504 = vmatprep.subr.mxu0 0.0
    %505 = vmatpush1.msra.mxu0 0.0
    %506 = vmatprep.subr.mxu0 0.0
    %507 = vmatpush1.msra.mxu0 0.0
    %508 = vmatprep.subr.mxu0 0.0
    %509 = vmatpush1.msra.mxu0 0.0
    %510 = vmatprep.subr.mxu0 0.0
    %511 = vmatpush1.msra.mxu0 0.0
    %512 = vmatprep.subr.mxu0 0.0
    %513 = vmatpush1.msra.mxu0 0.0
    %514 = vmatprep.subr.mxu0 0.0
    %515 = vmatpush1.msra.mxu0 0.0
    %516 = vmatprep.subr.mxu0 0.0
    %517 = vmatpush1.msra.mxu0 0.0
    %518 = vmatprep.subr.mxu0 0.0
    %519 = vmatpush1.msra.mxu0 0.0
    %520 = vmatprep.subr.mxu0 0.0
    %521 = vmatpush1.msra.mxu0 0.0
    %522 = vmatprep.subr.mxu0 0.0
    %523 = vmatpush1.msra.mxu0 0.0
    %524 = vmatprep.subr.mxu0 0.0
    %525 = vmatpush1.msra.mxu0 0.0
    %526 = vmatprep.subr.mxu0 0.0
    %527 = vmatpush1.msra.mxu0 0.0
    %528 = vmatprep.subr.mxu0 0.0
    %529 = vmatpush1.msra.mxu0 0.0
    %530 = vmatprep.subr.mxu0 0.0
    %531 = vmatpush1.msra.mxu0 0.0
    %532 = vmatprep.subr.mxu0 0.0
    %533 = vmatpush1.msra.mxu0 0.0
    %534 = vmatprep.mubr.f32.mxu0 0.0
    %535 = vmatmul.mubr.f32.gmra.mrb[0].mxu0 %v468
    %v536 = vpop.f32.mrb[0].mxu0
    %v537 = vadd.f32 0.0, %v536
    %v538 = vpop.f32.mrb[0].mxu0
    %539 = vdwg.mxu0
    %v540 = vadd.f32 %v466, %v537
    %v541 = vtanh.pop %v540
    %v542 = vld [vmem:[#allocation2 + $0x6] sm:$0x3]
    %v544 = vsel %vm192, %v541, 0
    %546 = vmatprep.subr.mxu0 0.0
    %547 = vmatpush1.msra.mxu0 %v306
    %548 = vmatprep.subr.mxu0 0.0
    %549 = vmatpush1.msra.mxu0 %v307
    %550 = vmatprep.subr.mxu0 0.0
    %551 = vmatpush1.msra.mxu0 %v308
    %552 = vmatprep.subr.mxu0 0.0
    %553 = vmatpush1.msra.mxu0 %v309
    %554 = vmatprep.subr.mxu0 0.0
    %555 = vmatpush1.msra.mxu0 0.0
    %556 = vmatprep.subr.mxu0 0.0
    %557 = vmatpush1.msra.mxu0 0.0
    %558 = vmatprep.subr.mxu0 0.0
    %559 = vmatpush1.msra.mxu0 0.0
    %560 = vmatprep.subr.mxu0 0.0
    %561 = vmatpush1.msra.mxu0 0.0
    %562 = vmatprep.subr.mxu0 0.0
    %563 = vmatpush1.msra.mxu0 0.0
    %564 = vmatprep.subr.mxu0 0.0
    %565 = vmatpush1.msra.mxu0 0.0
    %566 = vmatprep.subr.mxu0 0.0
    %567 = vmatpush1.msra.mxu0 0.0
    %568 = vmatprep.subr.mxu0 0.0
    %569 = vmatpush1.msra.mxu0 0.0
    %570 = vmatprep.subr.mxu0 0.0
    %571 = vmatpush1.msra.mxu0 0.0
    %572 = vmatprep.subr.mxu0 0.0
    %573 = vmatpush1.msra.mxu0 0.0
    %574 = vmatprep.subr.mxu0 0.0
    %575 = vmatpush1.msra.mxu0 0.0
    %576 = vmatprep.subr.mxu0 0.0
    %577 = vmatpush1.msra.mxu0 0.0
    %578 = vmatprep.subr.mxu0 0.0
    %579 = vmatpush1.msra.mxu0 0.0
    %580 = vmatprep.subr.mxu0 0.0
    %581 = vmatpush1.msra.mxu0 0.0
    %582 = vmatprep.subr.mxu0 0.0
    %583 = vmatpush1.msra.mxu0 0.0
    %584 = vmatprep.subr.mxu0 0.0
    %585 = vmatpush1.msra.mxu0 0.0
    %586 = vmatprep.subr.mxu0 0.0
    %587 = vmatpush1.msra.mxu0 0.0
    %588 = vmatprep.subr.mxu0 0.0
    %589 = vmatpush1.msra.mxu0 0.0
    %590 = vmatprep.subr.mxu0 0.0
    %591 = vmatpush1.msra.mxu0 0.0
    %592 = vmatprep.subr.mxu0 0.0
    %593 = vmatpush1.msra.mxu0 0.0
    %594 = vmatprep.subr.mxu0 0.0
    %595 = vmatpush1.msra.mxu0 0.0
    %596 = vmatprep.subr.mxu0 0.0
    %597 = vmatpush1.msra.mxu0 0.0
    %598 = vmatprep.subr.mxu0 0.0
    %599 = vmatpush1.msra.mxu0 0.0
    %600 = vmatprep.subr.mxu0 0.0
    %601 = vmatpush1.msra.mxu0 0.0
    %602 = vmatprep.subr.mxu0 0.0
    %603 = vmatpush1.msra.mxu0 0.0
    %604 = vmatprep.subr.mxu0 0.0
    %605 = vmatpush1.msra.mxu0 0.0
    %606 = vmatprep.subr.mxu0 0.0
    %607 = vmatpush1.msra.mxu0 0.0
    %608 = vmatprep.subr.mxu0 0.0
    %609 = vmatpush1.msra.mxu0 0.0
    %610 = vmatprep.mubr.f32.mxu0 0.0
    %611 = vmatmul.mubr.f32.gmra.mrb[0].mxu0 %v544
    %v612 = vpop.f32.mrb[0].mxu0
    %v613 = vadd.f32 0.0, %v612
    %v614 = vpop.f32.mrb[0].mxu0
    %615 = vdwg.mxu0
    %v616 = vadd.f32 %v542, %v613
    %v617 = vtanh.pop %v616
    %v618 = vld [vmem:[#allocation2 + $0x8] sm:$0x3]
    %v620 = vsel %vm192, %v617, 0
    %622 = vmatprep.subr.mxu0 0.0
    %623 = vmatpush1.msra.mxu0 %v306
    %624 = vmatprep.subr.mxu0 0.0
    %625 = vmatpush1.msra.mxu0 %v307
    %626 = vmatprep.subr.mxu0 0.0
    %627 = vmatpush1.msra.mxu0 %v308
    %628 = vmatprep.subr.mxu0 0.0
    %629 = vmatpush1.msra.mxu0 %v309
    %630 = vmatprep.subr.mxu0 0.0
    %631 = vmatpush1.msra.mxu0 0.0
    %632 = vmatprep.subr.mxu0 0.0
    %633 = vmatpush1.msra.mxu0 0.0
    %634 = vmatprep.subr.mxu0 0.0
    %635 = vmatpush1.msra.mxu0 0.0
    %636 = vmatprep.subr.mxu0 0.0
    %637 = vmatpush1.msra.mxu0 0.0
    %638 = vmatprep.subr.mxu0 0.0
    %639 = vmatpush1.msra.mxu0 0.0
    %640 = vmatprep.subr.mxu0 0.0
    %641 = vmatpush1.msra.mxu0 0.0
    %642 = vmatprep.subr.mxu0 0.0
    %643 = vmatpush1.msra.mxu0 0.0
    %644 = vmatprep.subr.mxu0 0.0
    %645 = vmatpush1.msra.mxu0 0.0
    %646 = vmatprep.subr.mxu0 0.0
    %647 = vmatpush1.msra.mxu0 0.0
    %648 = vmatprep.subr.mxu0 0.0
    %649 = vmatpush1.msra.mxu0 0.0
    %650 = vmatprep.subr.mxu0 0.0
    %651 = vmatpush1.msra.mxu0 0.0
    %652 = vmatprep.subr.mxu0 0.0
    %653 = vmatpush1.msra.mxu0 0.0
    %654 = vmatprep.subr.mxu0 0.0
    %655 = vmatpush1.msra.mxu0 0.0
    %656 = vmatprep.subr.mxu0 0.0
    %657 = vmatpush1.msra.mxu0 0.0
    %658 = vmatprep.subr.mxu0 0.0
    %659 = vmatpush1.msra.mxu0 0.0
    %660 = vmatprep.subr.mxu0 0.0
    %661 = vmatpush1.msra.mxu0 0.0
    %662 = vmatprep.subr.mxu0 0.0
    %663 = vmatpush1.msra.mxu0 0.0
    %664 = vmatprep.subr.mxu0 0.0
    %665 = vmatpush1.msra.mxu0 0.0
    %666 = vmatprep.subr.mxu0 0.0
    %667 = vmatpush1.msra.mxu0 0.0
    %668 = vmatprep.subr.mxu0 0.0
    %669 = vmatpush1.msra.mxu0 0.0
    %670 = vmatprep.subr.mxu0 0.0
    %671 = vmatpush1.msra.mxu0 0.0
    %672 = vmatprep.subr.mxu0 0.0
    %673 = vmatpush1.msra.mxu0 0.0
    %674 = vmatprep.subr.mxu0 0.0
    %675 = vmatpush1.msra.mxu0 0.0
    %676 = vmatprep.subr.mxu0 0.0
    %677 = vmatpush1.msra.mxu0 0.0
    %678 = vmatprep.subr.mxu0 0.0
    %679 = vmatpush1.msra.mxu0 0.0
    %680 = vmatprep.subr.mxu0 0.0
    %681 = vmatpush1.msra.mxu0 0.0
    %682 = vmatprep.subr.mxu0 0.0
    %683 = vmatpush1.msra.mxu0 0.0
    %684 = vmatprep.subr.mxu0 0.0
    %685 = vmatpush1.msra.mxu0 0.0
    %686 = vmatprep.mubr.f32.mxu0 0.0
    %687 = vmatmul.mubr.f32.gmra.mrb[0].mxu0 %v620
    %v688 = vpop.f32.mrb[0].mxu0
    %v689 = vadd.f32 0.0, %v688
    %v690 = vpop.f32.mrb[0].mxu0
    %691 = vdwg.mxu0
    %v692 = vadd.f32 %v618, %v689
    %v693 = vtanh.pop %v692
    %v694 = vld [vmem:[#allocation2 + $0xa] sm:$0x3]
    %v696 = vsel %vm192, %v693, 0
    %698 = vmatprep.subr.mxu0 0.0
    %699 = vmatpush1.msra.mxu0 %v306
    %700 = vmatprep.subr.mxu0 0.0
    %701 = vmatpush1.msra.mxu0 %v307
    %702 = vmatprep.subr.mxu0 0.0
    %703 = vmatpush1.msra.mxu0 %v308
    %704 = vmatprep.subr.mxu0 0.0
    %705 = vmatpush1.msra.mxu0 %v309
    %706 = vmatprep.subr.mxu0 0.0
    %707 = vmatpush1.msra.mxu0 0.0
    %708 = vmatprep.subr.mxu0 0.0
    %709 = vmatpush1.msra.mxu0 0.0
    %710 = vmatprep.subr.mxu0 0.0
    %711 = vmatpush1.msra.mxu0 0.0
    %712 = vmatprep.subr.mxu0 0.0
    %713 = vmatpush1.msra.mxu0 0.0
    %714 = vmatprep.subr.mxu0 0.0
    %715 = vmatpush1.msra.mxu0 0.0
    %716 = vmatprep.subr.mxu0 0.0
    %717 = vmatpush1.msra.mxu0 0.0
    %718 = vmatprep.subr.mxu0 0.0
    %719 = vmatpush1.msra.mxu0 0.0
    %720 = vmatprep.subr.mxu0 0.0
    %721 = vmatpush1.msra.mxu0 0.0
    %722 = vmatprep.subr.mxu0 0.0
    %723 = vmatpush1.msra.mxu0 0.0
    %724 = vmatprep.subr.mxu0 0.0
    %725 = vmatpush1.msra.mxu0 0.0
    %726 = vmatprep.subr.mxu0 0.0
    %727 = vmatpush1.msra.mxu0 0.0
    %728 = vmatprep.subr.mxu0 0.0
    %729 = vmatpush1.msra.mxu0 0.0
    %730 = vmatprep.subr.mxu0 0.0
    %731 = vmatpush1.msra.mxu0 0.0
    %732 = vmatprep.subr.mxu0 0.0
    %733 = vmatpush1.msra.mxu0 0.0
    %734 = vmatprep.subr.mxu0 0.0
    %735 = vmatpush1.msra.mxu0 0.0
    %736 = vmatprep.subr.mxu0 0.0
    %737 = vmatpush1.msra.mxu0 0.0
    %738 = vmatprep.subr.mxu0 0.0
    %739 = vmatpush1.msra.mxu0 0.0
    %740 = vmatprep.subr.mxu0 0.0
    %741 = vmatpush1.msra.mxu0 0.0
    %742 = vmatprep.subr.mxu0 0.0
    %743 = vmatpush1.msra.mxu0 0.0
    %744 = vmatprep.subr.mxu0 0.0
    %745 = vmatpush1.msra.mxu0 0.0
    %746 = vmatprep.subr.mxu0 0.0
    %747 = vmatpush1.msra.mxu0 0.0
    %748 = vmatprep.subr.mxu0 0.0
    %749 = vmatpush1.msra.mxu0 0.0
    %750 = vmatprep.subr.mxu0 0.0
    %751 = vmatpush1.msra.mxu0 0.0
    %752 = vmatprep.subr.mxu0 0.0
    %753 = vmatpush1.msra.mxu0 0.0
    %754 = vmatprep.subr.mxu0 0.0
    %755 = vmatpush1.msra.mxu0 0.0
    %756 = vmatprep.subr.mxu0 0.0
    %757 = vmatpush1.msra.mxu0 0.0
    %758 = vmatprep.subr.mxu0 0.0
    %759 = vmatpush1.msra.mxu0 0.0
    %760 = vmatprep.subr.mxu0 0.0
    %761 = vmatpush1.msra.mxu0 0.0
    %762 = vmatprep.mubr.f32.mxu0 0.0
    %763 = vmatmul.mubr.f32.gmra.mrb[0].mxu0 %v696
    %v764 = vpop.f32.mrb[0].mxu0
    %v765 = vadd.f32 0.0, %v764
    %v766 = vpop.f32.mrb[0].mxu0
    %767 = vdwg.mxu0
    %v768 = vadd.f32 %v694, %v765
    %v769 = vtanh.pop %v768
    %v770 = vld [vmem:[#allocation2 + $0xc] sm:$0x3]
    %v772 = vsel %vm192, %v769, 0
    %774 = vmatprep.subr.mxu0 0.0
    %775 = vmatpush1.msra.mxu0 %v306
    %776 = vmatprep.subr.mxu0 0.0
    %777 = vmatpush1.msra.mxu0 %v307
    %778 = vmatprep.subr.mxu0 0.0
    %779 = vmatpush1.msra.mxu0 %v308
    %780 = vmatprep.subr.mxu0 0.0
    %781 = vmatpush1.msra.mxu0 %v309
    %782 = vmatprep.subr.mxu0 0.0
    %783 = vmatpush1.msra.mxu0 0.0
    %784 = vmatprep.subr.mxu0 0.0
    %785 = vmatpush1.msra.mxu0 0.0
    %786 = vmatprep.subr.mxu0 0.0
    %787 = vmatpush1.msra.mxu0 0.0
    %788 = vmatprep.subr.mxu0 0.0
    %789 = vmatpush1.msra.mxu0 0.0
    %790 = vmatprep.subr.mxu0 0.0
    %791 = vmatpush1.msra.mxu0 0.0
    %792 = vmatprep.subr.mxu0 0.0
    %793 = vmatpush1.msra.mxu0 0.0
    %794 = vmatprep.subr.mxu0 0.0
    %795 = vmatpush1.msra.mxu0 0.0
    %796 = vmatprep.subr.mxu0 0.0
    %797 = vmatpush1.msra.mxu0 0.0
    %798 = vmatprep.subr.mxu0 0.0
    %799 = vmatpush1.msra.mxu0 0.0
    %800 = vmatprep.subr.mxu0 0.0
    %801 = vmatpush1.msra.mxu0 0.0
    %802 = vmatprep.subr.mxu0 0.0
    %803 = vmatpush1.msra.mxu0 0.0
    %804 = vmatprep.subr.mxu0 0.0
    %805 = vmatpush1.msra.mxu0 0.0
    %806 = vmatprep.subr.mxu0 0.0
    %807 = vmatpush1.msra.mxu0 0.0
    %808 = vmatprep.subr.mxu0 0.0
    %809 = vmatpush1.msra.mxu0 0.0
    %810 = vmatprep.subr.mxu0 0.0
    %811 = vmatpush1.msra.mxu0 0.0
    %812 = vmatprep.subr.mxu0 0.0
    %813 = vmatpush1.msra.mxu0 0.0
    %814 = vmatprep.subr.mxu0 0.0
    %815 = vmatpush1.msra.mxu0 0.0
    %816 = vmatprep.subr.mxu0 0.0
    %817 = vmatpush1.msra.mxu0 0.0
    %818 = vmatprep.subr.mxu0 0.0
    %819 = vmatpush1.msra.mxu0 0.0
    %820 = vmatprep.subr.mxu0 0.0
    %821 = vmatpush1.msra.mxu0 0.0
    %822 = vmatprep.subr.mxu0 0.0
    %823 = vmatpush1.msra.mxu0 0.0
    %824 = vmatprep.subr.mxu0 0.0
    %825 = vmatpush1.msra.mxu0 0.0
    %826 = vmatprep.subr.mxu0 0.0
    %827 = vmatpush1.msra.mxu0 0.0
    %828 = vmatprep.subr.mxu0 0.0
    %829 = vmatpush1.msra.mxu0 0.0
    %830 = vmatprep.subr.mxu0 0.0
    %831 = vmatpush1.msra.mxu0 0.0
    %832 = vmatprep.subr.mxu0 0.0
    %833 = vmatpush1.msra.mxu0 0.0
    %834 = vmatprep.subr.mxu0 0.0
    %835 = vmatpush1.msra.mxu0 0.0
    %836 = vmatprep.subr.mxu0 0.0
    %837 = vmatpush1.msra.mxu0 0.0
    %838 = vmatprep.mubr.f32.mxu0 0.0
    %839 = vmatmul.mubr.f32.gmra.mrb[0].mxu0 %v772
    %v840 = vpop.f32.mrb[0].mxu0
    %v841 = vadd.f32 0.0, %v840
    %v842 = vpop.f32.mrb[0].mxu0
    %843 = vdwg.mxu0
    %v844 = vadd.f32 %v770, %v841
    %v845 = vtanh.pop %v844
    %v846 = vld [vmem:[#allocation2 + $0xe] sm:$0x3]
    %v848 = vsel %vm192, %v845, 0
    %850 = vmatprep.subr.mxu0 0.0
    %851 = vmatpush1.msra.mxu0 %v306
    %852 = vmatprep.subr.mxu0 0.0
    %853 = vmatpush1.msra.mxu0 %v307
    %854 = vmatprep.subr.mxu0 0.0
    %855 = vmatpush1.msra.mxu0 %v308
    %856 = vmatprep.subr.mxu0 0.0
    %857 = vmatpush1.msra.mxu0 %v309
    %858 = vmatprep.subr.mxu0 0.0
    %859 = vmatpush1.msra.mxu0 0.0
    %860 = vmatprep.subr.mxu0 0.0
    %861 = vmatpush1.msra.mxu0 0.0
    %862 = vmatprep.subr.mxu0 0.0
    %863 = vmatpush1.msra.mxu0 0.0
    %864 = vmatprep.subr.mxu0 0.0
    %865 = vmatpush1.msra.mxu0 0.0
    %866 = vmatprep.subr.mxu0 0.0
    %867 = vmatpush1.msra.mxu0 0.0
    %868 = vmatprep.subr.mxu0 0.0
    %869 = vmatpush1.msra.mxu0 0.0
    %870 = vmatprep.subr.mxu0 0.0
    %871 = vmatpush1.msra.mxu0 0.0
    %872 = vmatprep.subr.mxu0 0.0
    %873 = vmatpush1.msra.mxu0 0.0
    %874 = vmatprep.subr.mxu0 0.0
    %875 = vmatpush1.msra.mxu0 0.0
    %876 = vmatprep.subr.mxu0 0.0
    %877 = vmatpush1.msra.mxu0 0.0
    %878 = vmatprep.subr.mxu0 0.0
    %879 = vmatpush1.msra.mxu0 0.0
    %880 = vmatprep.subr.mxu0 0.0
    %881 = vmatpush1.msra.mxu0 0.0
    %882 = vmatprep.subr.mxu0 0.0
    %883 = vmatpush1.msra.mxu0 0.0
    %884 = vmatprep.subr.mxu0 0.0
    %885 = vmatpush1.msra.mxu0 0.0
    %886 = vmatprep.subr.mxu0 0.0
    %887 = vmatpush1.msra.mxu0 0.0
    %888 = vmatprep.subr.mxu0 0.0
    %889 = vmatpush1.msra.mxu0 0.0
    %890 = vmatprep.subr.mxu0 0.0
    %891 = vmatpush1.msra.mxu0 0.0
    %892 = vmatprep.subr.mxu0 0.0
    %893 = vmatpush1.msra.mxu0 0.0
    %894 = vmatprep.subr.mxu0 0.0
    %895 = vmatpush1.msra.mxu0 0.0
    %896 = vmatprep.subr.mxu0 0.0
    %897 = vmatpush1.msra.mxu0 0.0
    %898 = vmatprep.subr.mxu0 0.0
    %899 = vmatpush1.msra.mxu0 0.0
    %900 = vmatprep.subr.mxu0 0.0
    %901 = vmatpush1.msra.mxu0 0.0
    %902 = vmatprep.subr.mxu0 0.0
    %903 = vmatpush1.msra.mxu0 0.0
    %904 = vmatprep.subr.mxu0 0.0
    %905 = vmatpush1.msra.mxu0 0.0
    %906 = vmatprep.subr.mxu0 0.0
    %907 = vmatpush1.msra.mxu0 0.0
    %908 = vmatprep.subr.mxu0 0.0
    %909 = vmatpush1.msra.mxu0 0.0
    %910 = vmatprep.subr.mxu0 0.0
    %911 = vmatpush1.msra.mxu0 0.0
    %912 = vmatprep.subr.mxu0 0.0
    %913 = vmatpush1.msra.mxu0 0.0
    %914 = vmatprep.mubr.f32.mxu0 0.0
    %915 = vmatmul.mubr.f32.gmra.mrb[0].mxu0 %v848
    %v916 = vpop.f32.mrb[0].mxu0
    %v917 = vadd.f32 0.0, %v916
    %v918 = vpop.f32.mrb[0].mxu0
    %919 = vdwg.mxu0
    %v920 = vadd.f32 %v846, %v917
    %v921 = vtanh.pop %v920
    %v922 = vld [vmem:[#allocation3] sm:$0x3]
    %v924 = vsel %vm192, %v921, 0
    %926 = vmatprep.subr.mxu0 0.0
    %927 = vmatpush1.msra.mxu0 %v310
    %928 = vmatprep.subr.mxu0 0.0
    %929 = vmatpush1.msra.mxu0 %v311
    %930 = vmatprep.subr.mxu0 0.0
    %931 = vmatpush1.msra.mxu0 %v312
    %932 = vmatprep.subr.mxu0 0.0
    %933 = vmatpush1.msra.mxu0 %v313
    %934 = vmatprep.subr.mxu0 0.0
    %935 = vmatpush1.msra.mxu0 0.0
    %936 = vmatprep.subr.mxu0 0.0
    %937 = vmatpush1.msra.mxu0 0.0
    %938 = vmatprep.subr.mxu0 0.0
    %939 = vmatpush1.msra.mxu0 0.0
    %940 = vmatprep.subr.mxu0 0.0
    %941 = vmatpush1.msra.mxu0 0.0
    %942 = vmatprep.subr.mxu0 0.0
    %943 = vmatpush1.msra.mxu0 0.0
    %944 = vmatprep.subr.mxu0 0.0
    %945 = vmatpush1.msra.mxu0 0.0
    %946 = vmatprep.subr.mxu0 0.0
    %947 = vmatpush1.msra.mxu0 0.0
    %948 = vmatprep.subr.mxu0 0.0
    %949 = vmatpush1.msra.mxu0 0.0
    %950 = vmatprep.subr.mxu0 0.0
    %951 = vmatpush1.msra.mxu0 0.0
    %952 = vmatprep.subr.mxu0 0.0
    %953 = vmatpush1.msra.mxu0 0.0
    %954 = vmatprep.subr.mxu0 0.0
    %955 = vmatpush1.msra.mxu0 0.0
    %956 = vmatprep.subr.mxu0 0.0
    %957 = vmatpush1.msra.mxu0 0.0
    %958 = vmatprep.subr.mxu0 0.0
    %959 = vmatpush1.msra.mxu0 0.0
    %960 = vmatprep.subr.mxu0 0.0
    %961 = vmatpush1.msra.mxu0 0.0
    %962 = vmatprep.subr.mxu0 0.0
    %963 = vmatpush1.msra.mxu0 0.0
    %964 = vmatprep.subr.mxu0 0.0
    %965 = vmatpush1.msra.mxu0 0.0
    %966 = vmatprep.subr.mxu0 0.0
    %967 = vmatpush1.msra.mxu0 0.0
    %968 = vmatprep.subr.mxu0 0.0
    %969 = vmatpush1.msra.mxu0 0.0
    %970 = vmatprep.subr.mxu0 0.0
    %971 = vmatpush1.msra.mxu0 0.0
    %972 = vmatprep.subr.mxu0 0.0
    %973 = vmatpush1.msra.mxu0 0.0
    %974 = vmatprep.subr.mxu0 0.0
    %975 = vmatpush1.msra.mxu0 0.0
    %976 = vmatprep.subr.mxu0 0.0
    %977 = vmatpush1.msra.mxu0 0.0
    %978 = vmatprep.subr.mxu0 0.0
    %979 = vmatpush1.msra.mxu0 0.0
    %980 = vmatprep.subr.mxu0 0.0
    %981 = vmatpush1.msra.mxu0 0.0
    %982 = vmatprep.subr.mxu0 0.0
    %983 = vmatpush1.msra.mxu0 0.0
    %984 = vmatprep.subr.mxu0 0.0
    %985 = vmatpush1.msra.mxu0 0.0
    %986 = vmatprep.subr.mxu0 0.0
    %987 = vmatpush1.msra.mxu0 0.0
    %988 = vmatprep.subr.mxu0 0.0
    %989 = vmatpush1.msra.mxu0 0.0
    %990 = vmatprep.mubr.f32.mxu0 0.0
    %991 = vmatmul.mubr.f32.gmra.mrb[0].mxu0 %v924
    %v992 = vpop.f32.mrb[0].mxu0
    %v993 = vadd.f32 0.0, %v992
    %v994 = vpop.f32.mrb[0].mxu0
    %995 = vdwg.mxu0
    %v996 = vadd.f32 %v922, %v993
    %v997 = vtanh.pop %v996
    %vm998 = vcmask 254976
    %999 = vst.msk [vmem:[#allocation4] sm:$0x3] %vm998, %v997
    %v1000 = vld [vmem:[#allocation3 + $0x2] sm:$0x3]
    %v1002 = vsel %vm192, %v997, 0
    %1004 = vmatprep.subr.mxu0 0.0
    %1005 = vmatpush1.msra.mxu0 %v310
    %1006 = vmatprep.subr.mxu0 0.0
    %1007 = vmatpush1.msra.mxu0 %v311
    %1008 = vmatprep.subr.mxu0 0.0
    %1009 = vmatpush1.msra.mxu0 %v312
    %1010 = vmatprep.subr.mxu0 0.0
    %1011 = vmatpush1.msra.mxu0 %v313
    %1012 = vmatprep.subr.mxu0 0.0
    %1013 = vmatpush1.msra.mxu0 0.0
    %1014 = vmatprep.subr.mxu0 0.0
    %1015 = vmatpush1.msra.mxu0 0.0
    %1016 = vmatprep.subr.mxu0 0.0
    %1017 = vmatpush1.msra.mxu0 0.0
    %1018 = vmatprep.subr.mxu0 0.0
    %1019 = vmatpush1.msra.mxu0 0.0
    %1020 = vmatprep.subr.mxu0 0.0
    %1021 = vmatpush1.msra.mxu0 0.0
    %1022 = vmatprep.subr.mxu0 0.0
    %1023 = vmatpush1.msra.mxu0 0.0
    %1024 = vmatprep.subr.mxu0 0.0
    %1025 = vmatpush1.msra.mxu0 0.0
    %1026 = vmatprep.subr.mxu0 0.0
    %1027 = vmatpush1.msra.mxu0 0.0
    %1028 = vmatprep.subr.mxu0 0.0
    %1029 = vmatpush1.msra.mxu0 0.0
    %1030 = vmatprep.subr.mxu0 0.0
    %1031 = vmatpush1.msra.mxu0 0.0
    %1032 = vmatprep.subr.mxu0 0.0
    %1033 = vmatpush1.msra.mxu0 0.0
    %1034 = vmatprep.subr.mxu0 0.0
    %1035 = vmatpush1.msra.mxu0 0.0
    %1036 = vmatprep.subr.mxu0 0.0
    %1037 = vmatpush1.msra.mxu0 0.0
    %1038 = vmatprep.subr.mxu0 0.0
    %1039 = vmatpush1.msra.mxu0 0.0
    %1040 = vmatprep.subr.mxu0 0.0
    %1041 = vmatpush1.msra.mxu0 0.0
    %1042 = vmatprep.subr.mxu0 0.0
    %1043 = vmatpush1.msra.mxu0 0.0
    %1044 = vmatprep.subr.mxu0 0.0
    %1045 = vmatpush1.msra.mxu0 0.0
    %1046 = vmatprep.subr.mxu0 0.0
    %1047 = vmatpush1.msra.mxu0 0.0
    %1048 = vmatprep.subr.mxu0 0.0
    %1049 = vmatpush1.msra.mxu0 0.0
    %1050 = vmatprep.subr.mxu0 0.0
    %1051 = vmatpush1.msra.mxu0 0.0
    %1052 = vmatprep.subr.mxu0 0.0
    %1053 = vmatpush1.msra.mxu0 0.0
    %1054 = vmatprep.subr.mxu0 0.0
    %1055 = vmatpush1.msra.mxu0 0.0
    %1056 = vmatprep.subr.mxu0 0.0
    %1057 = vmatpush1.msra.mxu0 0.0
    %1058 = vmatprep.subr.mxu0 0.0
    %1059 = vmatpush1.msra.mxu0 0.0
    %1060 = vmatprep.subr.mxu0 0.0
    %1061 = vmatpush1.msra.mxu0 0.0
    %1062 = vmatprep.subr.mxu0 0.0
    %1063 = vmatpush1.msra.mxu0 0.0
    %1064 = vmatprep.subr.mxu0 0.0
    %1065 = vmatpush1.msra.mxu0 0.0
    %1066 = vmatprep.subr.mxu0 0.0
    %1067 = vmatpush1.msra.mxu0 0.0
    %1068 = vmatprep.mubr.f32.mxu0 0.0
    %1069 = vmatmul.mubr.f32.gmra.mrb[0].mxu0 %v1002
    %v1070 = vpop.f32.mrb[0].mxu0
    %v1071 = vadd.f32 0.0, %v1070
    %v1072 = vpop.f32.mrb[0].mxu0
    %1073 = vdwg.mxu0
    %v1074 = vadd.f32 %v1000, %v1071
    %v1075 = vtanh.pop %v1074
    %1076 = vst.msk [vmem:[#allocation4 + $0x2] sm:$0x3] %vm998, %v1075
    %v1077 = vld [vmem:[#allocation3 + $0x4] sm:$0x3]
    %v1079 = vsel %vm192, %v1075, 0
    %1081 = vmatprep.subr.mxu0 0.0
    %1082 = vmatpush1.msra.mxu0 %v310
    %1083 = vmatprep.subr.mxu0 0.0
    %1084 = vmatpush1.msra.mxu0 %v311
    %1085 = vmatprep.subr.mxu0 0.0
    %1086 = vmatpush1.msra.mxu0 %v312
    %1087 = vmatprep.subr.mxu0 0.0
    %1088 = vmatpush1.msra.mxu0 %v313
    %1089 = vmatprep.subr.mxu0 0.0
    %1090 = vmatpush1.msra.mxu0 0.0
    %1091 = vmatprep.subr.mxu0 0.0
    %1092 = vmatpush1.msra.mxu0 0.0
    %1093 = vmatprep.subr.mxu0 0.0
    %1094 = vmatpush1.msra.mxu0 0.0
    %1095 = vmatprep.subr.mxu0 0.0
    %1096 = vmatpush1.msra.mxu0 0.0
    %1097 = vmatprep.subr.mxu0 0.0
    %1098 = vmatpush1.msra.mxu0 0.0
    %1099 = vmatprep.subr.mxu0 0.0
    %1100 = vmatpush1.msra.mxu0 0.0
    %1101 = vmatprep.subr.mxu0 0.0
    %1102 = vmatpush1.msra.mxu0 0.0
    %1103 = vmatprep.subr.mxu0 0.0
    %1104 = vmatpush1.msra.mxu0 0.0
    %1105 = vmatprep.subr.mxu0 0.0
    %1106 = vmatpush1.msra.mxu0 0.0
    %1107 = vmatprep.subr.mxu0 0.0
    %1108 = vmatpush1.msra.mxu0 0.0
    %1109 = vmatprep.subr.mxu0 0.0
    %1110 = vmatpush1.msra.mxu0 0.0
    %1111 = vmatprep.subr.mxu0 0.0
    %1112 = vmatpush1.msra.mxu0 0.0
    %1113 = vmatprep.subr.mxu0 0.0
    %1114 = vmatpush1.msra.mxu0 0.0
    %1115 = vmatprep.subr.mxu0 0.0
    %1116 = vmatpush1.msra.mxu0 0.0
    %1117 = vmatprep.subr.mxu0 0.0
    %1118 = vmatpush1.msra.mxu0 0.0
    %1119 = vmatprep.subr.mxu0 0.0
    %1120 = vmatpush1.msra.mxu0 0.0
    %1121 = vmatprep.subr.mxu0 0.0
    %1122 = vmatpush1.msra.mxu0 0.0
    %1123 = vmatprep.subr.mxu0 0.0
    %1124 = vmatpush1.msra.mxu0 0.0
    %1125 = vmatprep.subr.mxu0 0.0
    %1126 = vmatpush1.msra.mxu0 0.0
    %1127 = vmatprep.subr.mxu0 0.0
    %1128 = vmatpush1.msra.mxu0 0.0
    %1129 = vmatprep.subr.mxu0 0.0
    %1130 = vmatpush1.msra.mxu0 0.0
    %1131 = vmatprep.subr.mxu0 0.0
    %1132 = vmatpush1.msra.mxu0 0.0
    %1133 = vmatprep.subr.mxu0 0.0
    %1134 = vmatpush1.msra.mxu0 0.0
    %1135 = vmatprep.subr.mxu0 0.0
    %1136 = vmatpush1.msra.mxu0 0.0
    %1137 = vmatprep.subr.mxu0 0.0
    %1138 = vmatpush1.msra.mxu0 0.0
    %1139 = vmatprep.subr.mxu0 0.0
    %1140 = vmatpush1.msra.mxu0 0.0
    %1141 = vmatprep.subr.mxu0 0.0
    %1142 = vmatpush1.msra.mxu0 0.0
    %1143 = vmatprep.subr.mxu0 0.0
    %1144 = vmatpush1.msra.mxu0 0.0
    %1145 = vmatprep.mubr.f32.mxu0 0.0
    %1146 = vmatmul.mubr.f32.gmra.mrb[0].mxu0 %v1079
    %v1147 = vpop.f32.mrb[0].mxu0
    %v1148 = vadd.f32 0.0, %v1147
    %v1149 = vpop.f32.mrb[0].mxu0
    %1150 = vdwg.mxu0
    %v1151 = vadd.f32 %v1077, %v1148
    %v1152 = vtanh.pop %v1151
    %1153 = vst.msk [vmem:[#allocation4 + $0x4] sm:$0x3] %vm998, %v1152
    %v1154 = vld [vmem:[#allocation3 + $0x6] sm:$0x3]
    %v1156 = vsel %vm192, %v1152, 0
    %1158 = vmatprep.subr.mxu0 0.0
    %1159 = vmatpush1.msra.mxu0 %v310
    %1160 = vmatprep.subr.mxu0 0.0
    %1161 = vmatpush1.msra.mxu0 %v311
    %1162 = vmatprep.subr.mxu0 0.0
    %1163 = vmatpush1.msra.mxu0 %v312
    %1164 = vmatprep.subr.mxu0 0.0
    %1165 = vmatpush1.msra.mxu0 %v313
    %1166 = vmatprep.subr.mxu0 0.0
    %1167 = vmatpush1.msra.mxu0 0.0
    %1168 = vmatprep.subr.mxu0 0.0
    %1169 = vmatpush1.msra.mxu0 0.0
    %1170 = vmatprep.subr.mxu0 0.0
    %1171 = vmatpush1.msra.mxu0 0.0
    %1172 = vmatprep.subr.mxu0 0.0
    %1173 = vmatpush1.msra.mxu0 0.0
    %1174 = vmatprep.subr.mxu0 0.0
    %1175 = vmatpush1.msra.mxu0 0.0
    %1176 = vmatprep.subr.mxu0 0.0
    %1177 = vmatpush1.msra.mxu0 0.0
    %1178 = vmatprep.subr.mxu0 0.0
    %1179 = vmatpush1.msra.mxu0 0.0
    %1180 = vmatprep.subr.mxu0 0.0
    %1181 = vmatpush1.msra.mxu0 0.0
    %1182 = vmatprep.subr.mxu0 0.0
    %1183 = vmatpush1.msra.mxu0 0.0
    %1184 = vmatprep.subr.mxu0 0.0
    %1185 = vmatpush1.msra.mxu0 0.0
    %1186 = vmatprep.subr.mxu0 0.0
    %1187 = vmatpush1.msra.mxu0 0.0
    %1188 = vmatprep.subr.mxu0 0.0
    %1189 = vmatpush1.msra.mxu0 0.0
    %1190 = vmatprep.subr.mxu0 0.0
    %1191 = vmatpush1.msra.mxu0 0.0
    %1192 = vmatprep.subr.mxu0 0.0
    %1193 = vmatpush1.msra.mxu0 0.0
    %1194 = vmatprep.subr.mxu0 0.0
    %1195 = vmatpush1.msra.mxu0 0.0
    %1196 = vmatprep.subr.mxu0 0.0
    %1197 = vmatpush1.msra.mxu0 0.0
    %1198 = vmatprep.subr.mxu0 0.0
    %1199 = vmatpush1.msra.mxu0 0.0
    %1200 = vmatprep.subr.mxu0 0.0
    %1201 = vmatpush1.msra.mxu0 0.0
    %1202 = vmatprep.subr.mxu0 0.0
    %1203 = vmatpush1.msra.mxu0 0.0
    %1204 = vmatprep.subr.mxu0 0.0
    %1205 = vmatpush1.msra.mxu0 0.0
    %1206 = vmatprep.subr.mxu0 0.0
    %1207 = vmatpush1.msra.mxu0 0.0
    %1208 = vmatprep.subr.mxu0 0.0
    %1209 = vmatpush1.msra.mxu0 0.0
    %1210 = vmatprep.subr.mxu0 0.0
    %1211 = vmatpush1.msra.mxu0 0.0
    %1212 = vmatprep.subr.mxu0 0.0
    %1213 = vmatpush1.msra.mxu0 0.0
    %1214 = vmatprep.subr.mxu0 0.0
    %1215 = vmatpush1.msra.mxu0 0.0
    %1216 = vmatprep.subr.mxu0 0.0
    %1217 = vmatpush1.msra.mxu0 0.0
    %1218 = vmatprep.subr.mxu0 0.0
    %1219 = vmatpush1.msra.mxu0 0.0
    %1220 = vmatprep.subr.mxu0 0.0
    %1221 = vmatpush1.msra.mxu0 0.0
    %1222 = vmatprep.mubr.f32.mxu0 0.0
    %1223 = vmatmul.mubr.f32.gmra.mrb[0].mxu0 %v1156
    %v1224 = vpop.f32.mrb[0].mxu0
    %v1225 = vadd.f32 0.0, %v1224
    %v1226 = vpop.f32.mrb[0].mxu0
    %1227 = vdwg.mxu0
    %v1228 = vadd.f32 %v1154, %v1225
    %v1229 = vtanh.pop %v1228
    %1230 = vst.msk [vmem:[#allocation4 + $0x6] sm:$0x3] %vm998, %v1229
    %v1231 = vld [vmem:[#allocation3 + $0x8] sm:$0x3]
    %v1233 = vsel %vm192, %v1229, 0
    %1235 = vmatprep.subr.mxu0 0.0
    %1236 = vmatpush1.msra.mxu0 %v310
    %1237 = vmatprep.subr.mxu0 0.0
    %1238 = vmatpush1.msra.mxu0 %v311
    %1239 = vmatprep.subr.mxu0 0.0
    %1240 = vmatpush1.msra.mxu0 %v312
    %1241 = vmatprep.subr.mxu0 0.0
    %1242 = vmatpush1.msra.mxu0 %v313
    %1243 = vmatprep.subr.mxu0 0.0
    %1244 = vmatpush1.msra.mxu0 0.0
    %1245 = vmatprep.subr.mxu0 0.0
    %1246 = vmatpush1.msra.mxu0 0.0
    %1247 = vmatprep.subr.mxu0 0.0
    %1248 = vmatpush1.msra.mxu0 0.0
    %1249 = vmatprep.subr.mxu0 0.0
    %1250 = vmatpush1.msra.mxu0 0.0
    %1251 = vmatprep.subr.mxu0 0.0
    %1252 = vmatpush1.msra.mxu0 0.0
    %1253 = vmatprep.subr.mxu0 0.0
    %1254 = vmatpush1.msra.mxu0 0.0
    %1255 = vmatprep.subr.mxu0 0.0
    %1256 = vmatpush1.msra.mxu0 0.0
    %1257 = vmatprep.subr.mxu0 0.0
    %1258 = vmatpush1.msra.mxu0 0.0
    %1259 = vmatprep.subr.mxu0 0.0
    %1260 = vmatpush1.msra.mxu0 0.0
    %1261 = vmatprep.subr.mxu0 0.0
    %1262 = vmatpush1.msra.mxu0 0.0
    %1263 = vmatprep.subr.mxu0 0.0
    %1264 = vmatpush1.msra.mxu0 0.0
    %1265 = vmatprep.subr.mxu0 0.0
    %1266 = vmatpush1.msra.mxu0 0.0
    %1267 = vmatprep.subr.mxu0 0.0
    %1268 = vmatpush1.msra.mxu0 0.0
    %1269 = vmatprep.subr.mxu0 0.0
    %1270 = vmatpush1.msra.mxu0 0.0
    %1271 = vmatprep.subr.mxu0 0.0
    %1272 = vmatpush1.msra.mxu0 0.0
    %1273 = vmatprep.subr.mxu0 0.0
    %1274 = vmatpush1.msra.mxu0 0.0
    %1275 = vmatprep.subr.mxu0 0.0
    %1276 = vmatpush1.msra.mxu0 0.0
    %1277 = vmatprep.subr.mxu0 0.0
    %1278 = vmatpush1.msra.mxu0 0.0
    %1279 = vmatprep.subr.mxu0 0.0
    %1280 = vmatpush1.msra.mxu0 0.0
    %1281 = vmatprep.subr.mxu0 0.0
    %1282 = vmatpush1.msra.mxu0 0.0
    %1283 = vmatprep.subr.mxu0 0.0
    %1284 = vmatpush1.msra.mxu0 0.0
    %1285 = vmatprep.subr.mxu0 0.0
    %1286 = vmatpush1.msra.mxu0 0.0
    %1287 = vmatprep.subr.mxu0 0.0
    %1288 = vmatpush1.msra.mxu0 0.0
    %1289 = vmatprep.subr.mxu0 0.0
    %1290 = vmatpush1.msra.mxu0 0.0
    %1291 = vmatprep.subr.mxu0 0.0
    %1292 = vmatpush1.msra.mxu0 0.0
    %1293 = vmatprep.subr.mxu0 0.0
    %1294 = vmatpush1.msra.mxu0 0.0
    %1295 = vmatprep.subr.mxu0 0.0
    %1296 = vmatpush1.msra.mxu0 0.0
    %1297 = vmatprep.subr.mxu0 0.0
    %1298 = vmatpush1.msra.mxu0 0.0
    %1299 = vmatprep.mubr.f32.mxu0 0.0
    %1300 = vmatmul.mubr.f32.gmra.mrb[0].mxu0 %v1233
    %v1301 = vpop.f32.mrb[0].mxu0
    %v1302 = vadd.f32 0.0, %v1301
    %v1303 = vpop.f32.mrb[0].mxu0
    %1304 = vdwg.mxu0
    %v1305 = vadd.f32 %v1231, %v1302
    %v1306 = vtanh.pop %v1305
    %1307 = vst.msk [vmem:[#allocation4 + $0x8] sm:$0x3] %vm998, %v1306
    %v1308 = vld [vmem:[#allocation3 + $0xa] sm:$0x3]
    %v1310 = vsel %vm192, %v1306, 0
    %1312 = vmatprep.subr.mxu0 0.0
    %1313 = vmatpush1.msra.mxu0 %v310
    %1314 = vmatprep.subr.mxu0 0.0
    %1315 = vmatpush1.msra.mxu0 %v311
    %1316 = vmatprep.subr.mxu0 0.0
    %1317 = vmatpush1.msra.mxu0 %v312
    %1318 = vmatprep.subr.mxu0 0.0
    %1319 = vmatpush1.msra.mxu0 %v313
    %1320 = vmatprep.subr.mxu0 0.0
    %1321 = vmatpush1.msra.mxu0 0.0
    %1322 = vmatprep.subr.mxu0 0.0
    %1323 = vmatpush1.msra.mxu0 0.0
    %1324 = vmatprep.subr.mxu0 0.0
    %1325 = vmatpush1.msra.mxu0 0.0
    %1326 = vmatprep.subr.mxu0 0.0
    %1327 = vmatpush1.msra.mxu0 0.0
    %1328 = vmatprep.subr.mxu0 0.0
    %1329 = vmatpush1.msra.mxu0 0.0
    %1330 = vmatprep.subr.mxu0 0.0
    %1331 = vmatpush1.msra.mxu0 0.0
    %1332 = vmatprep.subr.mxu0 0.0
    %1333 = vmatpush1.msra.mxu0 0.0
    %1334 = vmatprep.subr.mxu0 0.0
    %1335 = vmatpush1.msra.mxu0 0.0
    %1336 = vmatprep.subr.mxu0 0.0
    %1337 = vmatpush1.msra.mxu0 0.0
    %1338 = vmatprep.subr.mxu0 0.0
    %1339 = vmatpush1.msra.mxu0 0.0
    %1340 = vmatprep.subr.mxu0 0.0
    %1341 = vmatpush1.msra.mxu0 0.0
    %1342 = vmatprep.subr.mxu0 0.0
    %1343 = vmatpush1.msra.mxu0 0.0
    %1344 = vmatprep.subr.mxu0 0.0
    %1345 = vmatpush1.msra.mxu0 0.0
    %1346 = vmatprep.subr.mxu0 0.0
    %1347 = vmatpush1.msra.mxu0 0.0
    %1348 = vmatprep.subr.mxu0 0.0
    %1349 = vmatpush1.msra.mxu0 0.0
    %1350 = vmatprep.subr.mxu0 0.0
    %1351 = vmatpush1.msra.mxu0 0.0
    %1352 = vmatprep.subr.mxu0 0.0
    %1353 = vmatpush1.msra.mxu0 0.0
    %1354 = vmatprep.subr.mxu0 0.0
    %1355 = vmatpush1.msra.mxu0 0.0
    %1356 = vmatprep.subr.mxu0 0.0
    %1357 = vmatpush1.msra.mxu0 0.0
    %1358 = vmatprep.subr.mxu0 0.0
    %1359 = vmatpush1.msra.mxu0 0.0
    %1360 = vmatprep.subr.mxu0 0.0
    %1361 = vmatpush1.msra.mxu0 0.0
    %1362 = vmatprep.subr.mxu0 0.0
    %1363 = vmatpush1.msra.mxu0 0.0
    %1364 = vmatprep.subr.mxu0 0.0
    %1365 = vmatpush1.msra.mxu0 0.0
    %1366 = vmatprep.subr.mxu0 0.0
    %1367 = vmatpush1.msra.mxu0 0.0
    %1368 = vmatprep.subr.mxu0 0.0
    %1369 = vmatpush1.msra.mxu0 0.0
    %1370 = vmatprep.subr.mxu0 0.0
    %1371 = vmatpush1.msra.mxu0 0.0
    %1372 = vmatprep.subr.mxu0 0.0
    %1373 = vmatpush1.msra.mxu0 0.0
    %1374 = vmatprep.subr.mxu0 0.0
    %1375 = vmatpush1.msra.mxu0 0.0
    %1376 = vmatprep.mubr.f32.mxu0 0.0
    %1377 = vmatmul.mubr.f32.gmra.mrb[0].mxu0 %v1310
    %v1378 = vpop.f32.mrb[0].mxu0
    %v1379 = vadd.f32 0.0, %v1378
    %v1380 = vpop.f32.mrb[0].mxu0
    %1381 = vdwg.mxu0
    %v1382 = vadd.f32 %v1308, %v1379
    %v1383 = vtanh.pop %v1382
    %1384 = vst.msk [vmem:[#allocation4 + $0xa] sm:$0x3] %vm998, %v1383
    %v1385 = vld [vmem:[#allocation3 + $0xc] sm:$0x3]
    %v1387 = vsel %vm192, %v1383, 0
    %1389 = vmatprep.subr.mxu0 0.0
    %1390 = vmatpush1.msra.mxu0 %v310
    %1391 = vmatprep.subr.mxu0 0.0
    %1392 = vmatpush1.msra.mxu0 %v311
    %1393 = vmatprep.subr.mxu0 0.0
    %1394 = vmatpush1.msra.mxu0 %v312
    %1395 = vmatprep.subr.mxu0 0.0
    %1396 = vmatpush1.msra.mxu0 %v313
    %1397 = vmatprep.subr.mxu0 0.0
    %1398 = vmatpush1.msra.mxu0 0.0
    %1399 = vmatprep.subr.mxu0 0.0
    %1400 = vmatpush1.msra.mxu0 0.0
    %1401 = vmatprep.subr.mxu0 0.0
    %1402 = vmatpush1.msra.mxu0 0.0
    %1403 = vmatprep.subr.mxu0 0.0
    %1404 = vmatpush1.msra.mxu0 0.0
    %1405 = vmatprep.subr.mxu0 0.0
    %1406 = vmatpush1.msra.mxu0 0.0
    %1407 = vmatprep.subr.mxu0 0.0
    %1408 = vmatpush1.msra.mxu0 0.0
    %1409 = vmatprep.subr.mxu0 0.0
    %1410 = vmatpush1.msra.mxu0 0.0
    %1411 = vmatprep.subr.mxu0 0.0
    %1412 = vmatpush1.msra.mxu0 0.0
    %1413 = vmatprep.subr.mxu0 0.0
    %1414 = vmatpush1.msra.mxu0 0.0
    %1415 = vmatprep.subr.mxu0 0.0
    %1416 = vmatpush1.msra.mxu0 0.0
    %1417 = vmatprep.subr.mxu0 0.0
    %1418 = vmatpush1.msra.mxu0 0.0
    %1419 = vmatprep.subr.mxu0 0.0
    %1420 = vmatpush1.msra.mxu0 0.0
    %1421 = vmatprep.subr.mxu0 0.0
    %1422 = vmatpush1.msra.mxu0 0.0
    %1423 = vmatprep.subr.mxu0 0.0
    %1424 = vmatpush1.msra.mxu0 0.0
    %1425 = vmatprep.subr.mxu0 0.0
    %1426 = vmatpush1.msra.mxu0 0.0
    %1427 = vmatprep.subr.mxu0 0.0
    %1428 = vmatpush1.msra.mxu0 0.0
    %1429 = vmatprep.subr.mxu0 0.0
    %1430 = vmatpush1.msra.mxu0 0.0
    %1431 = vmatprep.subr.mxu0 0.0
    %1432 = vmatpush1.msra.mxu0 0.0
    %1433 = vmatprep.subr.mxu0 0.0
    %1434 = vmatpush1.msra.mxu0 0.0
    %1435 = vmatprep.subr.mxu0 0.0
    %1436 = vmatpush1.msra.mxu0 0.0
    %1437 = vmatprep.subr.mxu0 0.0
    %1438 = vmatpush1.msra.mxu0 0.0
    %1439 = vmatprep.subr.mxu0 0.0
    %1440 = vmatpush1.msra.mxu0 0.0
    %1441 = vmatprep.subr.mxu0 0.0
    %1442 = vmatpush1.msra.mxu0 0.0
    %1443 = vmatprep.subr.mxu0 0.0
    %1444 = vmatpush1.msra.mxu0 0.0
    %1445 = vmatprep.subr.mxu0 0.0
    %1446 = vmatpush1.msra.mxu0 0.0
    %1447 = vmatprep.subr.mxu0 0.0
    %1448 = vmatpush1.msra.mxu0 0.0
    %1449 = vmatprep.subr.mxu0 0.0
    %1450 = vmatpush1.msra.mxu0 0.0
    %1451 = vmatprep.subr.mxu0 0.0
    %1452 = vmatpush1.msra.mxu0 0.0
    %1453 = vmatprep.mubr.f32.mxu0 0.0
    %1454 = vmatmul.mubr.f32.gmra.mrb[0].mxu0 %v1387
    %v1455 = vpop.f32.mrb[0].mxu0
    %v1456 = vadd.f32 0.0, %v1455
    %v1457 = vpop.f32.mrb[0].mxu0
    %1458 = vdwg.mxu0
    %v1459 = vadd.f32 %v1385, %v1456
    %v1460 = vtanh.pop %v1459
    %1461 = vst.msk [vmem:[#allocation4 + $0xc] sm:$0x3] %vm998, %v1460
    %v1462 = vld [vmem:[#allocation3 + $0xe] sm:$0x3]
    %v1464 = vsel %vm192, %v1460, 0
    %1466 = vmatprep.subr.mxu0 0.0
    %1467 = vmatpush1.msra.mxu0 %v310
    %1468 = vmatprep.subr.mxu0 0.0
    %1469 = vmatpush1.msra.mxu0 %v311
    %1470 = vmatprep.subr.mxu0 0.0
    %1471 = vmatpush1.msra.mxu0 %v312
    %1472 = vmatprep.subr.mxu0 0.0
    %1473 = vmatpush1.msra.mxu0 %v313
    %1474 = vmatprep.subr.mxu0 0.0
    %1475 = vmatpush1.msra.mxu0 0.0
    %1476 = vmatprep.subr.mxu0 0.0
    %1477 = vmatpush1.msra.mxu0 0.0
    %1478 = vmatprep.subr.mxu0 0.0
    %1479 = vmatpush1.msra.mxu0 0.0
    %1480 = vmatprep.subr.mxu0 0.0
    %1481 = vmatpush1.msra.mxu0 0.0
    %1482 = vmatprep.subr.mxu0 0.0
    %1483 = vmatpush1.msra.mxu0 0.0
    %1484 = vmatprep.subr.mxu0 0.0
    %1485 = vmatpush1.msra.mxu0 0.0
    %1486 = vmatprep.subr.mxu0 0.0
    %1487 = vmatpush1.msra.mxu0 0.0
    %1488 = vmatprep.subr.mxu0 0.0
    %1489 = vmatpush1.msra.mxu0 0.0
    %1490 = vmatprep.subr.mxu0 0.0
    %1491 = vmatpush1.msra.mxu0 0.0
    %1492 = vmatprep.subr.mxu0 0.0
    %1493 = vmatpush1.msra.mxu0 0.0
    %1494 = vmatprep.subr.mxu0 0.0
    %1495 = vmatpush1.msra.mxu0 0.0
    %1496 = vmatprep.subr.mxu0 0.0
    %1497 = vmatpush1.msra.mxu0 0.0
    %1498 = vmatprep.subr.mxu0 0.0
    %1499 = vmatpush1.msra.mxu0 0.0
    %1500 = vmatprep.subr.mxu0 0.0
    %1501 = vmatpush1.msra.mxu0 0.0
    %1502 = vmatprep.subr.mxu0 0.0
    %1503 = vmatpush1.msra.mxu0 0.0
    %1504 = vmatprep.subr.mxu0 0.0
    %1505 = vmatpush1.msra.mxu0 0.0
    %1506 = vmatprep.subr.mxu0 0.0
    %1507 = vmatpush1.msra.mxu0 0.0
    %1508 = vmatprep.subr.mxu0 0.0
    %1509 = vmatpush1.msra.mxu0 0.0
    %1510 = vmatprep.subr.mxu0 0.0
    %1511 = vmatpush1.msra.mxu0 0.0
    %1512 = vmatprep.subr.mxu0 0.0
    %1513 = vmatpush1.msra.mxu0 0.0
    %1514 = vmatprep.subr.mxu0 0.0
    %1515 = vmatpush1.msra.mxu0 0.0
    %1516 = vmatprep.subr.mxu0 0.0
    %1517 = vmatpush1.msra.mxu0 0.0
    %1518 = vmatprep.subr.mxu0 0.0
    %1519 = vmatpush1.msra.mxu0 0.0
    %1520 = vmatprep.subr.mxu0 0.0
    %1521 = vmatpush1.msra.mxu0 0.0
    %1522 = vmatprep.subr.mxu0 0.0
    %1523 = vmatpush1.msra.mxu0 0.0
    %1524 = vmatprep.subr.mxu0 0.0
    %1525 = vmatpush1.msra.mxu0 0.0
    %1526 = vmatprep.subr.mxu0 0.0
    %1527 = vmatpush1.msra.mxu0 0.0
    %1528 = vmatprep.subr.mxu0 0.0
    %1529 = vmatpush1.msra.mxu0 0.0
    %1530 = vmatprep.mubr.f32.mxu0 0.0
    %1531 = vmatmul.mubr.f32.gmra.mrb[0].mxu0 %v1464
    %v1532 = vpop.f32.mrb[0].mxu0
    %v1533 = vadd.f32 0.0, %v1532
    %v1534 = vpop.f32.mrb[0].mxu0
    %1535 = vdwg.mxu0
    %v1536 = vadd.f32 %v1462, %v1533
    %v1537 = vtanh.pop %v1536
    %1538 = vst.msk [vmem:[#allocation4 + $0xe] sm:$0x3] %vm998, %v1537
    %v1539 = vld [vmem:[#allocation4] sm:$0xff]
    %v1540 = vld [vmem:[#allocation4 + $0x8] sm:$0xff]
    %v1541 = vld [vmem:[#allocation11] sm:$0xff]
    %v1542 = vld [vmem:[#allocation11 + $0x8] sm:$0xff]
    %v1543 = vld [vmem:[#allocation11 + $0x10] sm:$0xff]
    %v1544 = vld [vmem:[#allocation11 + $0x18] sm:$0xff]
    %v1545 = vld [vmem:[%s8] sm:$0x1]
    %v1547 = vlaneseq
    %v1548 = vshrl.u32 %v1547, 7
    %v1549 = vsub.s32 0, %v1548
    %v1550 = vrot.slane %v1545, %v1549
    %v1553 = vsel %vm192, %v1539, 0
    %v1556 = vsel %vm192, %v1540, 0
    %1558 = vmatprep.subr.mxu0 0.0
    %1559 = vmatpush1.msra.mxu0 %v1541
    %1560 = vmatprep.subr.mxu0 0.0
    %1561 = vmatpush1.msra.mxu0 %v1542
    %1562 = vmatprep.subr.mxu0 0.0
    %1563 = vmatpush1.msra.mxu0 %v1543
    %1564 = vmatprep.subr.mxu0 0.0
    %1565 = vmatpush1.msra.mxu0 %v1544
    %1566 = vmatprep.subr.mxu0 0.0
    %1567 = vmatpush1.msra.mxu0 0.0
    %1568 = vmatprep.subr.mxu0 0.0
    %1569 = vmatpush1.msra.mxu0 0.0
    %1570 = vmatprep.subr.mxu0 0.0
    %1571 = vmatpush1.msra.mxu0 0.0
    %1572 = vmatprep.subr.mxu0 0.0
    %1573 = vmatpush1.msra.mxu0 0.0
    %1574 = vmatprep.subr.mxu0 0.0
    %1575 = vmatpush1.msra.mxu0 0.0
    %1576 = vmatprep.subr.mxu0 0.0
    %1577 = vmatpush1.msra.mxu0 0.0
    %1578 = vmatprep.subr.mxu0 0.0
    %1579 = vmatpush1.msra.mxu0 0.0
    %1580 = vmatprep.subr.mxu0 0.0
    %1581 = vmatpush1.msra.mxu0 0.0
    %1582 = vmatprep.subr.mxu0 0.0
    %1583 = vmatpush1.msra.mxu0 0.0
    %1584 = vmatprep.subr.mxu0 0.0
    %1585 = vmatpush1.msra.mxu0 0.0
    %1586 = vmatprep.subr.mxu0 0.0
    %1587 = vmatpush1.msra.mxu0 0.0
    %1588 = vmatprep.subr.mxu0 0.0
    %1589 = vmatpush1.msra.mxu0 0.0
    %1590 = vmatprep.subr.mxu0 0.0
    %1591 = vmatpush1.msra.mxu0 0.0
    %1592 = vmatprep.subr.mxu0 0.0
    %1593 = vmatpush1.msra.mxu0 0.0
    %1594 = vmatprep.subr.mxu0 0.0
    %1595 = vmatpush1.msra.mxu0 0.0
    %1596 = vmatprep.subr.mxu0 0.0
    %1597 = vmatpush1.msra.mxu0 0.0
    %1598 = vmatprep.subr.mxu0 0.0
    %1599 = vmatpush1.msra.mxu0 0.0
    %1600 = vmatprep.subr.mxu0 0.0
    %1601 = vmatpush1.msra.mxu0 0.0
    %1602 = vmatprep.subr.mxu0 0.0
    %1603 = vmatpush1.msra.mxu0 0.0
    %1604 = vmatprep.subr.mxu0 0.0
    %1605 = vmatpush1.msra.mxu0 0.0
    %1606 = vmatprep.subr.mxu0 0.0
    %1607 = vmatpush1.msra.mxu0 0.0
    %1608 = vmatprep.subr.mxu0 0.0
    %1609 = vmatpush1.msra.mxu0 0.0
    %1610 = vmatprep.subr.mxu0 0.0
    %1611 = vmatpush1.msra.mxu0 0.0
    %1612 = vmatprep.subr.mxu0 0.0
    %1613 = vmatpush1.msra.mxu0 0.0
    %1614 = vmatprep.subr.mxu0 0.0
    %1615 = vmatpush1.msra.mxu0 0.0
    %1616 = vmatprep.subr.mxu0 0.0
    %1617 = vmatpush1.msra.mxu0 0.0
    %1618 = vmatprep.subr.mxu0 0.0
    %1619 = vmatpush1.msra.mxu0 0.0
    %1620 = vmatprep.subr.mxu0 0.0
    %1621 = vmatpush1.msra.mxu0 0.0
    %1622 = vmatprep.mubr.f32.mxu0 0.0
    %1623 = vmatmul.mubr.f32.gmra.mrb[0].mxu0 %v1553
    %v1624 = vpop.f32.mrb[0].mxu0
    %v1625 = vadd.f32 %v1550, %v1624
    %v1626 = vpop.f32.mrb[0].mxu0
    %1627 = vmatprep.mubr.f32.mxu0 0.0
    %1628 = vmatmul.mubr.f32.gmra.mrb[0].mxu0 %v1556
    %v1629 = vpop.f32.mrb[0].mxu0
    %v1630 = vadd.f32 %v1550, %v1629
    %v1631 = vpop.f32.mrb[0].mxu0
    %1632 = vdwg.mxu0
    %1633 = vst [vmem:[#allocation13] sm:$0xff] %v1625
    %1634 = vst [vmem:[#allocation13 + $0x8] sm:$0xff] %v1630
    // Predicated region
    $region54: #{tpu_custom_call.1} parent=1 // pred_check
      _
    $region55: #{tpu_custom_call.1} parent=1 // pred_check_branch
      %1636 = sbr.rel (0) target = $region57
    $region56: #{tpu_custom_call.1} parent=1 // pred_region
      %s1638 = ssub.s32 256, 256
      %1639 = vsyncadd [#allocation7], %s1638
      %s1640 = sshll.u32 [#allocation13], 4
      %s1641 = int_to_ptr.vmem [resolvable:$true] %s1640
      %1646 = dma.vmem_to_hbm [thread:$0]  %s1641, 256, %s9, [#allocation7], 128, 128, 8
    $region57: #{tpu_custom_call.1} parent=1 // pred_fallthru
      _
    // Predicated region
    $region58: #{tpu_custom_call.1} parent=1 // pred_check
      _
    $region59: #{tpu_custom_call.1} parent=1 // pred_check_branch
      %1648 = sbr.rel (0) target = $region61
    $region60: #{tpu_custom_call.1} parent=1 // pred_region
      %1649 = dma.done [#allocation7], 256
    $region61: #{tpu_custom_call.1} parent=1 // pred_fallthru
      _
    %1650 = vsyncpa [#allocation6], 1
    %1651 = vsyncpa [#allocation9], 1
    %1652 = vsyncpa [#allocation12], 1
    %1653 = vsyncpa [#allocation7], 1

</llo_original>
